<compile_context>
chip_gen: v6e
topology: v6e:2x2x1
jax: 0.10.0
libtpu: 0.0.40
codegen_flags: <defaults>
</compile_context>

<pallas_src>
import functools

import jax
import jax.numpy as jnp
from jax.experimental import pallas as pl
from jax.experimental.pallas import tpu as pltpu

EPS = 1e-5
LANE = 128


def _round_up(x, m):
    return (x + m - 1) // m * m


def _bn_affine(h, gamma, beta):
    """Biased batch-norm over axis 0 (f32), two-pass centered variance."""
    mu = jnp.mean(h, axis=0, keepdims=True)
    c = h - mu
    var = jnp.mean(c * c, axis=0, keepdims=True)
    scale = jax.lax.rsqrt(var + EPS)
    if gamma is not None:
        scale = scale * gamma
    out = c * scale
    if beta is not None:
        out = out + beta
    return out


def _dnn3_kernel(x_ref, w1_ref, bn_ref, w2_ref, w3_ref, o_ref, acc_ref, *,
                 label_num, x_is_resident):
    k = pl.program_id(0)

    @pl.when(k == 0)
    def _():
        acc_ref[...] = jnp.zeros_like(acc_ref)

    # ---- fc1, K-tiled: accumulate (B, M) in f32 on the MXU (bf16 inputs) ----
    if x_is_resident:
        x_tile = x_ref[k]          # resident (grid_k, B, tk) slab, dynamic index
    else:
        x_tile = x_ref[...]        # streamed (B, tk) block
    acc_ref[...] += jnp.dot(x_tile, w1_ref[...],
                            preferred_element_type=jnp.float32)

    @pl.when(k == pl.num_programs(0) - 1)
    def _():
        g1, b1 = bn_ref[0:1, :], bn_ref[1:2, :]
        g2, b2 = bn_ref[2:3, :], bn_ref[3:4, :]

        # ---- bn1 + relu -------------------------------------------------
        h = jnp.maximum(_bn_affine(acc_ref[...], g1, b1), 0.0)

        # ---- fc2 + bn2 + relu -------------------------------------------
        h = jnp.dot(h.astype(jnp.bfloat16), w2_ref[...],
                    preferred_element_type=jnp.float32)
        h = jnp.maximum(_bn_affine(h, g2, b2), 0.0)

        # ---- fc3 + bn3 (no affine) ---------------------------------------
        h = jnp.dot(h.astype(jnp.bfloat16), w3_ref[...],
                    preferred_element_type=jnp.float32)
        h = _bn_affine(h, None, None)

        # ---- masked log_softmax over the lane-padded label dimension ------
        col = jax.lax.broadcasted_iota(jnp.int32, h.shape, 1)
        valid = col < label_num
        h = jnp.where(valid, h, -1e30)
        m = jnp.max(h, axis=1, keepdims=True)
        z = h - m
        e = jnp.where(valid, jnp.exp(z), 0.0)
        lse = jnp.log(jnp.sum(e, axis=1, keepdims=True))
        o_ref[...] = (z - lse).astype(o_ref.dtype)


def _vmem_budget_bytes():
    """Generation-aware VMEM budget: 3/4 of physical (48 MiB on v7x, 96 on v5e/v6e)."""
    try:
        phys = int(pltpu.get_tpu_info().vmem_capacity_bytes)
    except Exception:
        phys = 64 << 20   # assume the smallest (v7x per-TC) if the query fails
    return min((phys * 3) // 4, 112 << 20)


def _vmem_bytes(B, tk, Fpad, M, Lpad, grid_k, x_resident):
    """Honest per-buffer accounting of the kernel's VMEM footprint."""
    b = 0
    b += (B * Fpad * 2) if x_resident else (2 * B * tk * 2)   # x (bf16)
    b += (2 if grid_k > 1 else 1) * tk * M * 2                # w1 K-tiles (bf16)
    b += M * M * 2 + M * Lpad * 2                             # resident w2 / w3 (bf16)
    b += 4 * M * 4                                            # packed BN gammas/betas
    b += B * Lpad * 4                                         # resident output
    b += B * M * 4                                            # f32 accumulator scratch
    b += 4 * B * M * 4 + 2 * B * Lpad * 4                     # epilogue f32 temporaries
    return b


def _choose_tk(B, F, M, Lpad, budget):
    """Largest K-tile (<= 2048) whose footprint fits the VMEM budget."""
    full = _round_up(F, LANE)
    for cand in (2048, 1024, 512, 256, LANE):
        cand = min(cand, full)
        fpad = _round_up(F, cand)
        gk = fpad // cand
        xr = B * fpad * 2 <= (8 << 20)
        if _vmem_bytes(B, cand, fpad, M, Lpad, gk, xr) + (8 << 20) <= budget:
            return cand
    return LANE


def dnn3_forward(x, params, *, tk=None, force_stream_x=False):
    """x: (B, sample_size) float32. params: dict of weights (see init_params)."""
    w1t, g1, b1 = params["w1t"], params["g1"], params["b1"]
    w2t, g2, b2 = params["w2t"], params["g2"], params["b2"]
    w3t = params["w3t"]

    B, F = x.shape
    M = w1t.shape[1]
    label_num = w3t.shape[1]
    assert M % LANE == 0, "model_size must be a multiple of 128"

    # Lane-dense label dim: pad fc3 columns with zeros, mask inside the kernel.
    Lpad = _round_up(label_num, LANE)
    if Lpad != label_num:
        w3t = jnp.pad(w3t, ((0, 0), (0, Lpad - label_num)))

    budget = _vmem_budget_bytes()

    # K-tile for fc1 (the only tensor that scales with sample_size).
    if tk is None:
        tk = _choose_tk(B, F, M, Lpad, budget)
    Fpad = _round_up(F, tk)
    if Fpad != F:  # zero-pad the reduction dim: does not change the matmul result
        x = jnp.pad(x, ((0, 0), (0, Fpad - F)))
        w1t = jnp.pad(w1t, ((0, Fpad - F), (0, 0)))
    grid_k = Fpad // tk

    # Small x -> keep it fully resident; otherwise stream (B, tk) K-tiles.
    x_resident = (grid_k == 1) or (not force_stream_x and B * Fpad * 2 <= (8 << 20))

    # bf16 for every MXU operand: halves all streamed HBM bytes vs f32.
    x = x.astype(jnp.bfloat16)
    w1t = w1t.astype(jnp.bfloat16)
    w2t = w2t.astype(jnp.bfloat16)
    w3t = w3t.astype(jnp.bfloat16)

    # Packed BN affine params -> one resident (4, M) block instead of 4 tiny DMAs.
    bn12 = jnp.concatenate([g1, b1, g2, b2], axis=0).astype(jnp.float32)

    if x_resident:
        # (grid_k, B, tk): each K-tile is a contiguous slab, picked with x_ref[k].
        x_op = x.reshape(B, grid_k, tk).transpose(1, 0, 2)
    else:
        x_op = x

    estimate = _vmem_bytes(B, tk, Fpad, M, Lpad, grid_k, x_resident)
    vmem_limit = min(budget, max(estimate + (8 << 20), 32 << 20))

    flops = 2 * B * (Fpad * M + M * M + M * Lpad)
    bytes_accessed = (B * Fpad * 2 + Fpad * M * 2 + M * M * 2 + M * Lpad * 2
                      + 4 * M * 4 + B * Lpad * 4)
    cost = pl.CostEstimate(flops=flops,
                           transcendentals=2 * M + Lpad + B * (Lpad + 1),
                           bytes_accessed=bytes_accessed)

    kernel = functools.partial(_dnn3_kernel, label_num=label_num,
                               x_is_resident=x_resident)

    def call(single_buffer_residents):
        def resident(shape):
            if single_buffer_residents:
                return pl.BlockSpec(shape, lambda k: (0,) * len(shape),
                                    pipeline_mode=pl.Buffered(1))
            return pl.BlockSpec(shape, lambda k: (0,) * len(shape))

        if x_resident:
            x_spec = resident((grid_k, B, tk))
        else:
            x_spec = pl.BlockSpec((B, tk), lambda k: (0, k))

        # w1 is the dominant stream: keep it double-buffered unless grid_k == 1.
        w1_spec = (pl.BlockSpec((tk, M), lambda k: (k, 0)) if grid_k > 1
                   else resident((tk, M)))

        return pl.pallas_call(
            kernel,
            out_shape=jax.ShapeDtypeStruct((B, Lpad), jnp.float32),
            grid_spec=pltpu.PrefetchScalarGridSpec(
                num_scalar_prefetch=0,
                grid=(grid_k,),
                in_specs=[
                    x_spec,
                    w1_spec,
                    resident((4, M)),        # packed g1/b1/g2/b2
                    resident((M, M)),        # w2
                    resident((M, Lpad)),     # w3 (lane-padded)
                ],
                out_specs=resident((B, Lpad)),
                scratch_shapes=[pltpu.VMEM((B, M), jnp.float32)],
            ),
            compiler_params=pltpu.CompilerParams(
                dimension_semantics=("arbitrary",),
                vmem_limit_bytes=vmem_limit,
            ),
            cost_estimate=cost,
        )(x_op, w1t, bn12, w2t, w3t)

    try:
        out = jax.block_until_ready(call(single_buffer_residents=True))
    except Exception:
        # Fallback for jax builds that reject single-buffered BlockSpecs on the
        # pallas_call pipeline path; identical semantics, slightly more VMEM.
        out = jax.block_until_ready(call(single_buffer_residents=False))

    return out[:, :label_num]


def init_params(key, sample_size, model_size, label_num):
    """Deterministic synthetic parameter init (shapes match the PyTorch module).

    fc weights are stored pre-transposed: (in_features, out_features).
    BN gamma/beta are stored as (1, C) rows for TPU-friendly broadcasting.
    """
    k1, k2, k3, k4, k5 = jax.random.split(key, 5)
    scale1 = 1.0 / jnp.sqrt(sample_size)
    scale2 = 1.0 / jnp.sqrt(model_size)
    return {
        "w1t": jax.random.uniform(k1, (sample_size, model_size), jnp.float32,
                                  -scale1, scale1),
        "g1": 1.0 + 0.1 * jax.random.normal(k4, (1, model_size), jnp.float32),
        "b1": 0.1 * jax.random.normal(k5, (1, model_size), jnp.float32),
        "w2t": jax.random.uniform(k2, (model_size, model_size), jnp.float32,
                                  -scale2, scale2),
        "g2": jnp.ones((1, model_size), jnp.float32),
        "b2": jnp.zeros((1, model_size), jnp.float32),
        "w3t": jax.random.uniform(k3, (model_size, label_num), jnp.float32,
                                  -scale2, scale2),
    }


def reference_forward(x, params, matmul_dtype=jnp.float32):
    """Plain-JAX reference (mirrors the PyTorch forward).

    matmul_dtype=jnp.bfloat16 emulates the kernel's bf16-input / f32-accumulate
    matmuls so it can be compared at tight tolerance.
    """
    def mm(a, b):
        return jnp.dot(a.astype(matmul_dtype), b.astype(matmul_dtype),
                       preferred_element_type=jnp.float32)

    def bn(h, g=None, b=None):
        mu = jnp.mean(h, axis=0, keepdims=True)
        var = jnp.mean((h - mu) ** 2, axis=0, keepdims=True)
        h = (h - mu) / jnp.sqrt(var + EPS)
        if g is not None:
            h = h * g + b
        return h

    h = mm(x, params["w1t"])
    h = jnp.maximum(bn(h, params["g1"], params["b1"]), 0.0)
    h = mm(h, params["w2t"])
    h = jnp.maximum(bn(h, params["g2"], params["b2"]), 0.0)
    h = mm(h, params["w3t"])
    h = bn(h)
    return jax.nn.log_softmax(h, axis=1)


# TODO(synk): the module's distributed partition/flush bookkeeping
# (partition_to_list / flush / s*, r* send-recv slots) is training-harness
# state, not part of forward(), and is intentionally not translated.

if __name__ == "__main__":
    # Small shapes consistent with the module's forward (Linear/BatchNorm1d on 2-D input).
    batch = 8
    sample_size = 256
    model_size = 128
    label_num = 35

    key = jax.random.PRNGKey(0)
    kx, kp = jax.random.split(key)
    x = jax.random.normal(kx, (batch, sample_size), jnp.float32)
    params = init_params(kp, sample_size, model_size, label_num)

    # Path 1: resident x with in-kernel K-tile indexing (tk=128 -> 2 grid steps).
    out = dnn3_forward(x, params, tk=128)
    out = jax.block_until_ready(out)
    assert out.shape == (batch, label_num)

    # Path 2: streamed (B, tk) x blocks (exercises the pipelined-x BlockSpec path).
    out2 = dnn3_forward(x, params, tk=128, force_stream_x=True)
    out2 = jax.block_until_ready(out2)
    assert out2.shape == (batch, label_num)

    # Tight check vs. a bf16-matmul/f32-BN reference (same arithmetic as the kernel).
    ref_bf16 = reference_forward(x, params, matmul_dtype=jnp.bfloat16)
    err1 = float(jnp.max(jnp.abs(out - ref_bf16)))
    err2 = float(jnp.max(jnp.abs(out2 - ref_bf16)))
    assert err1 < 1e-2, err1
    assert err2 < 1e-2, err2

    # Loose sanity check vs. the full-f32 PyTorch-equivalent reference.
    ref_f32 = reference_forward(x, params, matmul_dtype=jnp.float32)
    err_f32 = float(jnp.max(jnp.abs(out - ref_f32)))
    assert err_f32 < 0.5, err_f32

    print("KERNEL_OK")
</pallas_src>

<mosaic_0001>
module attributes {stable_mosaic.version = 11 : i64} {
  func.func @_dnn3_kernel(%arg0: i32, %arg1: memref<2x8x128xbf16, #tpu.memory_space<vmem>>, %arg2: memref<128x128xbf16, #tpu.memory_space<vmem>>, %arg3: memref<4x128xf32, #tpu.memory_space<vmem>>, %arg4: memref<128x128xbf16, #tpu.memory_space<vmem>>, %arg5: memref<128x128xbf16, #tpu.memory_space<vmem>>, %arg6: memref<8x128xf32, #tpu.memory_space<vmem>>, %arg7: memref<8x128xf32, #tpu.memory_space<vmem>>) attributes {dimension_semantics = [#tpu.dimension_semantics<arbitrary>], iteration_bounds = array<i64: 2>, scalar_prefetch = 0 : i64, scratch_operands = 1 : i64, tpu.core_type = #tpu.core_type<tc>, window_params = [{pipeline_mode = #tpu.pipeline_mode<synchronous>, transform_indices = @transform_0, window_bounds = array<i64: 2, 8, 128>}, {transform_indices = @transform_1, window_bounds = array<i64: 128, 128>}, {pipeline_mode = #tpu.pipeline_mode<synchronous>, transform_indices = @transform_2, window_bounds = array<i64: 4, 128>}, {pipeline_mode = #tpu.pipeline_mode<synchronous>, transform_indices = @transform_3, window_bounds = array<i64: 128, 128>}, {pipeline_mode = #tpu.pipeline_mode<synchronous>, transform_indices = @transform_4, window_bounds = array<i64: 128, 128>}, {pipeline_mode = #tpu.pipeline_mode<synchronous>, transform_indices = @transform_5, window_bounds = array<i64: 8, 128>}]} {
    %c0_i32 = arith.constant 0 : i32
    %0 = arith.cmpi eq, %arg0, %c0_i32 : i32
    %1 = arith.extui %0 : i1 to i32
    %c0_i32_0 = arith.constant 0 : i32
    %2 = arith.cmpi ne, %1, %c0_i32_0 : i32
    scf.if %2 {
      %cst_9 = arith.constant 0.000000e+00 : f32
      %14 = vector.broadcast %cst_9 : f32 to vector<8x128xf32>
      %c0_10 = arith.constant 0 : index
      %c0_11 = arith.constant 0 : index
      %15 = vector.load %arg7[%c0_10, %c0_11] : memref<8x128xf32, #tpu.memory_space<vmem>>, vector<8x128xf32>
      tpu.vector_store %arg7[%c0_10, %c0_11], %14 {strides = array<i32>} : memref<8x128xf32, #tpu.memory_space<vmem>>, vector<8x128xf32>,
    } else {
    }
    %3 = arith.index_cast %arg0 : i32 to index
    %c0 = arith.constant 0 : index
    %c0_1 = arith.constant 0 : index
    %4 = vector.load %arg1[%3, %c0, %c0_1] : memref<2x8x128xbf16, #tpu.memory_space<vmem>>, vector<1x8x128xbf16>
    %5 = vector.shape_cast %4 : vector<1x8x128xbf16> to vector<8x128xbf16>
    %c0_2 = arith.constant 0 : index
    %c0_3 = arith.constant 0 : index
    %6 = vector.load %arg7[%c0_2, %c0_3] : memref<8x128xf32, #tpu.memory_space<vmem>>, vector<8x128xf32>
    %c0_4 = arith.constant 0 : index
    %c0_5 = arith.constant 0 : index
    %7 = vector.load %arg2[%c0_4, %c0_5] : memref<128x128xbf16, #tpu.memory_space<vmem>>, vector<128x128xbf16>
    %cst = arith.constant dense<0.000000e+00> : vector<8x128xf32>
    %8 = tpu.matmul %5, %7, %cst {dimension_numbers = #tpu.dot_dimension_numbers<[1], [0], [0], [1], [0, 0, 1, 1], [], []>} : vector<8x128xbf16>, vector<128x128xbf16>, vector<8x128xf32> -> vector<8x128xf32>
    %9 = arith.addf %6, %8 : vector<8x128xf32>
    %c0_6 = arith.constant 0 : index
    %c0_7 = arith.constant 0 : index
    %10 = vector.load %arg7[%c0_6, %c0_7] : memref<8x128xf32, #tpu.memory_space<vmem>>, vector<8x128xf32>
    tpu.vector_store %arg7[%c0_6, %c0_7], %9 {strides = array<i32>} : memref<8x128xf32, #tpu.memory_space<vmem>>, vector<8x128xf32>,
    %c1_i32 = arith.constant 1 : i32
    %11 = arith.cmpi eq, %arg0, %c1_i32 : i32
    %12 = arith.extui %11 : i1 to i32
    %c0_i32_8 = arith.constant 0 : i32
    %13 = arith.cmpi ne, %12, %c0_i32_8 : i32
    scf.if %13 {
      %c0_9 = arith.constant 0 : index
      %c0_10 = arith.constant 0 : index
      %14 = vector.load %arg3[%c0_9, %c0_10] : memref<4x128xf32, #tpu.memory_space<vmem>>, vector<1x128xf32>
      %c1 = arith.constant 1 : index
      %c0_11 = arith.constant 0 : index
      %15 = vector.load %arg3[%c1, %c0_11] : memref<4x128xf32, #tpu.memory_space<vmem>>, vector<1x128xf32>
      %c2 = arith.constant 2 : index
      %c0_12 = arith.constant 0 : index
      %16 = vector.load %arg3[%c2, %c0_12] : memref<4x128xf32, #tpu.memory_space<vmem>>, vector<1x128xf32>
      %c3 = arith.constant 3 : index
      %c0_13 = arith.constant 0 : index
      %17 = vector.load %arg3[%c3, %c0_13] : memref<4x128xf32, #tpu.memory_space<vmem>>, vector<1x128xf32>
      %c0_14 = arith.constant 0 : index
      %c0_15 = arith.constant 0 : index
      %18 = vector.load %arg7[%c0_14, %c0_15] : memref<8x128xf32, #tpu.memory_space<vmem>>, vector<8x128xf32>
      %cst_16 = arith.constant dense<0.000000e+00> : vector<128xf32>
      %19 = vector.multi_reduction <add>, %18, %cst_16 [0] : vector<8x128xf32> to vector<128xf32>
      %20 = vector.shape_cast %19 : vector<128xf32> to vector<1x128xf32>
      %cst_17 = arith.constant 8.000000e+00 : f32
      %21 = vector.broadcast %cst_17 : f32 to vector<1x128xf32>
      %22 = arith.divf %20, %21 : vector<1x128xf32>
      %23 = vector.broadcast %22 : vector<1x128xf32> to vector<8x128xf32>
      %24 = arith.subf %18, %23 : vector<8x128xf32>
      %25 = arith.mulf %24, %24 : vector<8x128xf32>
      %cst_18 = arith.constant dense<0.000000e+00> : vector<128xf32>
      %26 = vector.multi_reduction <add>, %25, %cst_18 [0] : vector<8x128xf32> to vector<128xf32>
      %27 = vector.shape_cast %26 : vector<128xf32> to vector<1x128xf32>
      %cst_19 = arith.constant 8.000000e+00 : f32
      %28 = vector.broadcast %cst_19 : f32 to vector<1x128xf32>
      %29 = arith.divf %27, %28 : vector<1x128xf32>
      %cst_20 = arith.constant 9.99999974E-6 : f32
      %30 = vector.broadcast %cst_20 : f32 to vector<1x128xf32>
      %31 = arith.addf %29, %30 : vector<1x128xf32>
      %32 = math.rsqrt %31 : vector<1x128xf32>
      %33 = arith.mulf %32, %14 : vector<1x128xf32>
      %34 = vector.broadcast %33 : vector<1x128xf32> to vector<8x128xf32>
      %35 = arith.mulf %24, %34 : vector<8x128xf32>
      %36 = vector.broadcast %15 : vector<1x128xf32> to vector<8x128xf32>
      %37 = arith.addf %35, %36 : vector<8x128xf32>
      %cst_21 = arith.constant 0.000000e+00 : f32
      %38 = vector.broadcast %cst_21 : f32 to vector<8x128xf32>
      %39 = arith.maximumf %37, %38 : vector<8x128xf32>
      %40 = arith.truncf %39 : vector<8x128xf32> to vector<8x128xbf16>
      %c0_22 = arith.constant 0 : index
      %c0_23 = arith.constant 0 : index
      %41 = vector.load %arg4[%c0_22, %c0_23] : memref<128x128xbf16, #tpu.memory_space<vmem>>, vector<128x128xbf16>
      %cst_24 = arith.constant dense<0.000000e+00> : vector<8x128xf32>
      %42 = tpu.matmul %40, %41, %cst_24 {dimension_numbers = #tpu.dot_dimension_numbers<[1], [0], [0], [1], [0, 0, 1, 1], [], []>} : vector<8x128xbf16>, vector<128x128xbf16>, vector<8x128xf32> -> vector<8x128xf32>
      %cst_25 = arith.constant dense<0.000000e+00> : vector<128xf32>
      %43 = vector.multi_reduction <add>, %42, %cst_25 [0] : vector<8x128xf32> to vector<128xf32>
      %44 = vector.shape_cast %43 : vector<128xf32> to vector<1x128xf32>
      %cst_26 = arith.constant 8.000000e+00 : f32
      %45 = vector.broadcast %cst_26 : f32 to vector<1x128xf32>
      %46 = arith.divf %44, %45 : vector<1x128xf32>
      %47 = vector.broadcast %46 : vector<1x128xf32> to vector<8x128xf32>
      %48 = arith.subf %42, %47 : vector<8x128xf32>
      %49 = arith.mulf %48, %48 : vector<8x128xf32>
      %cst_27 = arith.constant dense<0.000000e+00> : vector<128xf32>
      %50 = vector.multi_reduction <add>, %49, %cst_27 [0] : vector<8x128xf32> to vector<128xf32>
      %51 = vector.shape_cast %50 : vector<128xf32> to vector<1x128xf32>
      %cst_28 = arith.constant 8.000000e+00 : f32
      %52 = vector.broadcast %cst_28 : f32 to vector<1x128xf32>
      %53 = arith.divf %51, %52 : vector<1x128xf32>
      %cst_29 = arith.constant 9.99999974E-6 : f32
      %54 = vector.broadcast %cst_29 : f32 to vector<1x128xf32>
      %55 = arith.addf %53, %54 : vector<1x128xf32>
      %56 = math.rsqrt %55 : vector<1x128xf32>
      %57 = arith.mulf %56, %16 : vector<1x128xf32>
      %58 = vector.broadcast %57 : vector<1x128xf32> to vector<8x128xf32>
      %59 = arith.mulf %48, %58 : vector<8x128xf32>
      %60 = vector.broadcast %17 : vector<1x128xf32> to vector<8x128xf32>
      %61 = arith.addf %59, %60 : vector<8x128xf32>
      %cst_30 = arith.constant 0.000000e+00 : f32
      %62 = vector.broadcast %cst_30 : f32 to vector<8x128xf32>
      %63 = arith.maximumf %61, %62 : vector<8x128xf32>
      %64 = arith.truncf %63 : vector<8x128xf32> to vector<8x128xbf16>
      %c0_31 = arith.constant 0 : index
      %c0_32 = arith.constant 0 : index
      %65 = vector.load %arg5[%c0_31, %c0_32] : memref<128x128xbf16, #tpu.memory_space<vmem>>, vector<128x128xbf16>
      %cst_33 = arith.constant dense<0.000000e+00> : vector<8x128xf32>
      %66 = tpu.matmul %64, %65, %cst_33 {dimension_numbers = #tpu.dot_dimension_numbers<[1], [0], [0], [1], [0, 0, 1, 1], [], []>} : vector<8x128xbf16>, vector<128x128xbf16>, vector<8x128xf32> -> vector<8x128xf32>
      %cst_34 = arith.constant dense<0.000000e+00> : vector<128xf32>
      %67 = vector.multi_reduction <add>, %66, %cst_34 [0] : vector<8x128xf32> to vector<128xf32>
      %68 = vector.shape_cast %67 : vector<128xf32> to vector<1x128xf32>
      %cst_35 = arith.constant 8.000000e+00 : f32
      %69 = vector.broadcast %cst_35 : f32 to vector<1x128xf32>
      %70 = arith.divf %68, %69 : vector<1x128xf32>
      %71 = vector.broadcast %70 : vector<1x128xf32> to vector<8x128xf32>
      %72 = arith.subf %66, %71 : vector<8x128xf32>
      %73 = arith.mulf %72, %72 : vector<8x128xf32>
      %cst_36 = arith.constant dense<0.000000e+00> : vector<128xf32>
      %74 = vector.multi_reduction <add>, %73, %cst_36 [0] : vector<8x128xf32> to vector<128xf32>
      %75 = vector.shape_cast %74 : vector<128xf32> to vector<1x128xf32>
      %cst_37 = arith.constant 8.000000e+00 : f32
      %76 = vector.broadcast %cst_37 : f32 to vector<1x128xf32>
      %77 = arith.divf %75, %76 : vector<1x128xf32>
      %cst_38 = arith.constant 9.99999974E-6 : f32
      %78 = vector.broadcast %cst_38 : f32 to vector<1x128xf32>
      %79 = arith.addf %77, %78 : vector<1x128xf32>
      %80 = math.rsqrt %79 : vector<1x128xf32>
      %81 = vector.broadcast %80 : vector<1x128xf32> to vector<8x128xf32>
      %82 = arith.mulf %72, %81 : vector<8x128xf32>
      %83 = tpu.iota {dimensions = array<i32: 1>} : vector<8x128xi32>
      %c35_i32 = arith.constant 35 : i32
      %84 = vector.broadcast %c35_i32 : i32 to vector<8x128xi32>
      %85 = arith.cmpi slt, %83, %84 : vector<8x128xi32>
      %cst_39 = arith.constant -1.000000e+30 : f32
      %86 = vector.broadcast %cst_39 : f32 to vector<8x128xf32>
      %87 = arith.select %85, %82, %86 : vector<8x128xi1>, vector<8x128xf32>
      %cst_40 = arith.constant dense<0xFF800000> : vector<8xf32>
      %88 = vector.multi_reduction <maximumf>, %87, %cst_40 [1] : vector<8x128xf32> to vector<8xf32>
      %89 = vector.shape_cast %88 : vector<8xf32> to vector<8x1xf32>
      %90 = vector.broadcast %89 : vector<8x1xf32> to vector<8x128xf32>
      %91 = arith.subf %87, %90 : vector<8x128xf32>
      %92 = math.exp %91 : vector<8x128xf32>
      %cst_41 = arith.constant 0.000000e+00 : f32
      %93 = vector.broadcast %cst_41 : f32 to vector<8x128xf32>
      %94 = arith.select %85, %92, %93 : vector<8x128xi1>, vector<8x128xf32>
      %cst_42 = arith.constant dense<0.000000e+00> : vector<8xf32>
      %95 = vector.multi_reduction <add>, %94, %cst_42 [1] : vector<8x128xf32> to vector<8xf32>
      %96 = vector.shape_cast %95 : vector<8xf32> to vector<8x1xf32>
      %97 = math.log %96 : vector<8x1xf32>
      %98 = vector.broadcast %97 : vector<8x1xf32> to vector<8x128xf32>
      %99 = arith.subf %91, %98 : vector<8x128xf32>
      %c0_43 = arith.constant 0 : index
      %c0_44 = arith.constant 0 : index
      %100 = vector.load %arg6[%c0_43, %c0_44] : memref<8x128xf32, #tpu.memory_space<vmem>>, vector<8x128xf32>
      tpu.vector_store %arg6[%c0_43, %c0_44], %99 {strides = array<i32>} : memref<8x128xf32, #tpu.memory_space<vmem>>, vector<8x128xf32>,
    } else {
    }
    return
  }
  func.func @transform_0(%arg0: i32) -> (i32, i32, i32) {
    %c0_i32 = arith.constant 0 : i32
    %c0_i32_0 = arith.constant 0 : i32
    %c0_i32_1 = arith.constant 0 : i32
    %c0_i32_2 = arith.constant 0 : i32
    return %c0_i32, %c0_i32_0, %c0_i32_1 : i32, i32, i32
  }
  func.func @transform_1(%arg0: i32) -> (i32, i32) {
    %c0_i32 = arith.constant 0 : i32
    %c0_i32_0 = arith.constant 0 : i32
    return %arg0, %c0_i32 : i32, i32
  }
  func.func @transform_2(%arg0: i32) -> (i32, i32) {
    %c0_i32 = arith.constant 0 : i32
    %c0_i32_0 = arith.constant 0 : i32
    %c0_i32_1 = arith.constant 0 : i32
    return %c0_i32, %c0_i32_0 : i32, i32
  }
  func.func @transform_3(%arg0: i32) -> (i32, i32) {
    %c0_i32 = arith.constant 0 : i32
    %c0_i32_0 = arith.constant 0 : i32
    %c0_i32_1 = arith.constant 0 : i32
    return %c0_i32, %c0_i32_0 : i32, i32
  }
  func.func @transform_4(%arg0: i32) -> (i32, i32) {
    %c0_i32 = arith.constant 0 : i32
    %c0_i32_0 = arith.constant 0 : i32
    %c0_i32_1 = arith.constant 0 : i32
    return %c0_i32, %c0_i32_0 : i32, i32
  }
  func.func @transform_5(%arg0: i32) -> (i32, i32) {
    %c0_i32 = arith.constant 0 : i32
    %c0_i32_0 = arith.constant 0 : i32
    %c0_i32_1 = arith.constant 0 : i32
    return %c0_i32, %c0_i32_0 : i32, i32
  }
}

module attributes {stable_mosaic.version = 11 : i64} {
  func.func @_dnn3_kernel(%arg0: i32, %arg1: memref<2x8x128xbf16, #tpu.memory_space<vmem>>, %arg2: memref<128x128xbf16, #tpu.memory_space<vmem>>, %arg3: memref<4x128xf32, #tpu.memory_space<vmem>>, %arg4: memref<128x128xbf16, #tpu.memory_space<vmem>>, %arg5: memref<128x128xbf16, #tpu.memory_space<vmem>>, %arg6: memref<8x128xf32, #tpu.memory_space<vmem>>, %arg7: memref<8x128xf32, #tpu.memory_space<vmem>>) attributes {dimension_semantics = [#tpu.dimension_semantics<arbitrary>], iteration_bounds = array<i64: 2>, scalar_prefetch = 0 : i64, scratch_operands = 1 : i64, tpu.core_type = #tpu.core_type<tc>, window_params = [{pipeline_mode = #tpu.pipeline_mode<synchronous>, transform_indices = @transform_0, window_bounds = array<i64: 2, 8, 128>}, {transform_indices = @transform_1, window_bounds = array<i64: 128, 128>}, {pipeline_mode = #tpu.pipeline_mode<synchronous>, transform_indices = @transform_2, window_bounds = array<i64: 4, 128>}, {pipeline_mode = #tpu.pipeline_mode<synchronous>, transform_indices = @transform_3, window_bounds = array<i64: 128, 128>}, {pipeline_mode = #tpu.pipeline_mode<synchronous>, transform_indices = @transform_4, window_bounds = array<i64: 128, 128>}, {pipeline_mode = #tpu.pipeline_mode<synchronous>, transform_indices = @transform_5, window_bounds = array<i64: 8, 128>}]} {
    %c0_i32 = arith.constant 0 : i32
    %0 = arith.cmpi eq, %arg0, %c0_i32 : i32
    %1 = arith.extui %0 : i1 to i32
    %c0_i32_0 = arith.constant 0 : i32
    %2 = arith.cmpi ne, %1, %c0_i32_0 : i32
    scf.if %2 {
      %cst_9 = arith.constant 0.000000e+00 : f32
      %14 = vector.broadcast %cst_9 : f32 to vector<8x128xf32>
      %c0_10 = arith.constant 0 : index
      %c0_11 = arith.constant 0 : index
      %15 = vector.load %arg7[%c0_10, %c0_11] : memref<8x128xf32, #tpu.memory_space<vmem>>, vector<8x128xf32>
      tpu.vector_store %arg7[%c0_10, %c0_11], %14 {strides = array<i32>} : memref<8x128xf32, #tpu.memory_space<vmem>>, vector<8x128xf32>,
    } else {
    }
    %3 = arith.index_cast %arg0 : i32 to index
    %c0 = arith.constant 0 : index
    %c0_1 = arith.constant 0 : index
    %4 = vector.load %arg1[%3, %c0, %c0_1] : memref<2x8x128xbf16, #tpu.memory_space<vmem>>, vector<1x8x128xbf16>
    %5 = vector.shape_cast %4 : vector<1x8x128xbf16> to vector<8x128xbf16>
    %c0_2 = arith.constant 0 : index
    %c0_3 = arith.constant 0 : index
    %6 = vector.load %arg7[%c0_2, %c0_3] : memref<8x128xf32, #tpu.memory_space<vmem>>, vector<8x128xf32>
    %c0_4 = arith.constant 0 : index
    %c0_5 = arith.constant 0 : index
    %7 = vector.load %arg2[%c0_4, %c0_5] : memref<128x128xbf16, #tpu.memory_space<vmem>>, vector<128x128xbf16>
    %cst = arith.constant dense<0.000000e+00> : vector<8x128xf32>
    %8 = tpu.matmul %5, %7, %cst {dimension_numbers = #tpu.dot_dimension_numbers<[1], [0], [0], [1], [0, 0, 1, 1], [], []>} : vector<8x128xbf16>, vector<128x128xbf16>, vector<8x128xf32> -> vector<8x128xf32>
    %9 = arith.addf %6, %8 : vector<8x128xf32>
    %c0_6 = arith.constant 0 : index
    %c0_7 = arith.constant 0 : index
    %10 = vector.load %arg7[%c0_6, %c0_7] : memref<8x128xf32, #tpu.memory_space<vmem>>, vector<8x128xf32>
    tpu.vector_store %arg7[%c0_6, %c0_7], %9 {strides = array<i32>} : memref<8x128xf32, #tpu.memory_space<vmem>>, vector<8x128xf32>,
    %c1_i32 = arith.constant 1 : i32
    %11 = arith.cmpi eq, %arg0, %c1_i32 : i32
    %12 = arith.extui %11 : i1 to i32
    %c0_i32_8 = arith.constant 0 : i32
    %13 = arith.cmpi ne, %12, %c0_i32_8 : i32
    scf.if %13 {
      %c0_9 = arith.constant 0 : index
      %c0_10 = arith.constant 0 : index
      %14 = vector.load %arg3[%c0_9, %c0_10] : memref<4x128xf32, #tpu.memory_space<vmem>>, vector<1x128xf32>
      %c1 = arith.constant 1 : index
      %c0_11 = arith.constant 0 : index
      %15 = vector.load %arg3[%c1, %c0_11] : memref<4x128xf32, #tpu.memory_space<vmem>>, vector<1x128xf32>
      %c2 = arith.constant 2 : index
      %c0_12 = arith.constant 0 : index
      %16 = vector.load %arg3[%c2, %c0_12] : memref<4x128xf32, #tpu.memory_space<vmem>>, vector<1x128xf32>
      %c3 = arith.constant 3 : index
      %c0_13 = arith.constant 0 : index
      %17 = vector.load %arg3[%c3, %c0_13] : memref<4x128xf32, #tpu.memory_space<vmem>>, vector<1x128xf32>
      %c0_14 = arith.constant 0 : index
      %c0_15 = arith.constant 0 : index
      %18 = vector.load %arg7[%c0_14, %c0_15] : memref<8x128xf32, #tpu.memory_space<vmem>>, vector<8x128xf32>
      %cst_16 = arith.constant dense<0.000000e+00> : vector<128xf32>
      %19 = vector.multi_reduction <add>, %18, %cst_16 [0] : vector<8x128xf32> to vector<128xf32>
      %20 = vector.shape_cast %19 : vector<128xf32> to vector<1x128xf32>
      %cst_17 = arith.constant 8.000000e+00 : f32
      %21 = vector.broadcast %cst_17 : f32 to vector<1x128xf32>
      %22 = arith.divf %20, %21 : vector<1x128xf32>
      %23 = vector.broadcast %22 : vector<1x128xf32> to vector<8x128xf32>
      %24 = arith.subf %18, %23 : vector<8x128xf32>
      %25 = arith.mulf %24, %24 : vector<8x128xf32>
      %cst_18 = arith.constant dense<0.000000e+00> : vector<128xf32>
      %26 = vector.multi_reduction <add>, %25, %cst_18 [0] : vector<8x128xf32> to vector<128xf32>
      %27 = vector.shape_cast %26 : vector<128xf32> to vector<1x128xf32>
      %cst_19 = arith.constant 8.000000e+00 : f32
      %28 = vector.broadcast %cst_19 : f32 to vector<1x128xf32>
      %29 = arith.divf %27, %28 : vector<1x128xf32>
      %cst_20 = arith.constant 9.99999974E-6 : f32
      %30 = vector.broadcast %cst_20 : f32 to vector<1x128xf32>
      %31 = arith.addf %29, %30 : vector<1x128xf32>
      %32 = math.rsqrt %31 : vector<1x128xf32>
      %33 = arith.mulf %32, %14 : vector<1x128xf32>
      %34 = vector.broadcast %33 : vector<1x128xf32> to vector<8x128xf32>
      %35 = arith.mulf %24, %34 : vector<8x128xf32>
      %36 = vector.broadcast %15 : vector<1x128xf32> to vector<8x128xf32>
      %37 = arith.addf %35, %36 : vector<8x128xf32>
      %cst_21 = arith.constant 0.000000e+00 : f32
      %38 = vector.broadcast %cst_21 : f32 to vector<8x128xf32>
      %39 = arith.maximumf %37, %38 : vector<8x128xf32>
      %40 = arith.truncf %39 : vector<8x128xf32> to vector<8x128xbf16>
      %c0_22 = arith.constant 0 : index
      %c0_23 = arith.constant 0 : index
      %41 = vector.load %arg4[%c0_22, %c0_23] : memref<128x128xbf16, #tpu.memory_space<vmem>>, vector<128x128xbf16>
      %cst_24 = arith.constant dense<0.000000e+00> : vector<8x128xf32>
      %42 = tpu.matmul %40, %41, %cst_24 {dimension_numbers = #tpu.dot_dimension_numbers<[1], [0], [0], [1], [0, 0, 1, 1], [], []>} : vector<8x128xbf16>, vector<128x128xbf16>, vector<8x128xf32> -> vector<8x128xf32>
      %cst_25 = arith.constant dense<0.000000e+00> : vector<128xf32>
      %43 = vector.multi_reduction <add>, %42, %cst_25 [0] : vector<8x128xf32> to vector<128xf32>
      %44 = vector.shape_cast %43 : vector<128xf32> to vector<1x128xf32>
      %cst_26 = arith.constant 8.000000e+00 : f32
      %45 = vector.broadcast %cst_26 : f32 to vector<1x128xf32>
      %46 = arith.divf %44, %45 : vector<1x128xf32>
      %47 = vector.broadcast %46 : vector<1x128xf32> to vector<8x128xf32>
      %48 = arith.subf %42, %47 : vector<8x128xf32>
      %49 = arith.mulf %48, %48 : vector<8x128xf32>
      %cst_27 = arith.constant dense<0.000000e+00> : vector<128xf32>
      %50 = vector.multi_reduction <add>, %49, %cst_27 [0] : vector<8x128xf32> to vector<128xf32>
      %51 = vector.shape_cast %50 : vector<128xf32> to vector<1x128xf32>
      %cst_28 = arith.constant 8.000000e+00 : f32
      %52 = vector.broadcast %cst_28 : f32 to vector<1x128xf32>
      %53 = arith.divf %51, %52 : vector<1x128xf32>
      %cst_29 = arith.constant 9.99999974E-6 : f32
      %54 = vector.broadcast %cst_29 : f32 to vector<1x128xf32>
      %55 = arith.addf %53, %54 : vector<1x128xf32>
      %56 = math.rsqrt %55 : vector<1x128xf32>
      %57 = arith.mulf %56, %16 : vector<1x128xf32>
      %58 = vector.broadcast %57 : vector<1x128xf32> to vector<8x128xf32>
      %59 = arith.mulf %48, %58 : vector<8x128xf32>
      %60 = vector.broadcast %17 : vector<1x128xf32> to vector<8x128xf32>
      %61 = arith.addf %59, %60 : vector<8x128xf32>
      %cst_30 = arith.constant 0.000000e+00 : f32
      %62 = vector.broadcast %cst_30 : f32 to vector<8x128xf32>
      %63 = arith.maximumf %61, %62 : vector<8x128xf32>
      %64 = arith.truncf %63 : vector<8x128xf32> to vector<8x128xbf16>
      %c0_31 = arith.constant 0 : index
      %c0_32 = arith.constant 0 : index
      %65 = vector.load %arg5[%c0_31, %c0_32] : memref<128x128xbf16, #tpu.memory_space<vmem>>, vector<128x128xbf16>
      %cst_33 = arith.constant dense<0.000000e+00> : vector<8x128xf32>
      %66 = tpu.matmul %64, %65, %cst_33 {dimension_numbers = #tpu.dot_dimension_numbers<[1], [0], [0], [1], [0, 0, 1, 1], [], []>} : vector<8x128xbf16>, vector<128x128xbf16>, vector<8x128xf32> -> vector<8x128xf32>
      %cst_34 = arith.constant dense<0.000000e+00> : vector<128xf32>
      %67 = vector.multi_reduction <add>, %66, %cst_34 [0] : vector<8x128xf32> to vector<128xf32>
      %68 = vector.shape_cast %67 : vector<128xf32> to vector<1x128xf32>
      %cst_35 = arith.constant 8.000000e+00 : f32
      %69 = vector.broadcast %cst_35 : f32 to vector<1x128xf32>
      %70 = arith.divf %68, %69 : vector<1x128xf32>
      %71 = vector.broadcast %70 : vector<1x128xf32> to vector<8x128xf32>
      %72 = arith.subf %66, %71 : vector<8x128xf32>
      %73 = arith.mulf %72, %72 : vector<8x128xf32>
      %cst_36 = arith.constant dense<0.000000e+00> : vector<128xf32>
      %74 = vector.multi_reduction <add>, %73, %cst_36 [0] : vector<8x128xf32> to vector<128xf32>
      %75 = vector.shape_cast %74 : vector<128xf32> to vector<1x128xf32>
      %cst_37 = arith.constant 8.000000e+00 : f32
      %76 = vector.broadcast %cst_37 : f32 to vector<1x128xf32>
      %77 = arith.divf %75, %76 : vector<1x128xf32>
      %cst_38 = arith.constant 9.99999974E-6 : f32
      %78 = vector.broadcast %cst_38 : f32 to vector<1x128xf32>
      %79 = arith.addf %77, %78 : vector<1x128xf32>
      %80 = math.rsqrt %79 : vector<1x128xf32>
      %81 = vector.broadcast %80 : vector<1x128xf32> to vector<8x128xf32>
      %82 = arith.mulf %72, %81 : vector<8x128xf32>
      %83 = tpu.iota {dimensions = array<i32: 1>} : vector<8x128xi32>
      %c35_i32 = arith.constant 35 : i32
      %84 = vector.broadcast %c35_i32 : i32 to vector<8x128xi32>
      %85 = arith.cmpi slt, %83, %84 : vector<8x128xi32>
      %cst_39 = arith.constant -1.000000e+30 : f32
      %86 = vector.broadcast %cst_39 : f32 to vector<8x128xf32>
      %87 = arith.select %85, %82, %86 : vector<8x128xi1>, vector<8x128xf32>
      %cst_40 = arith.constant dense<0xFF800000> : vector<8xf32>
      %88 = vector.multi_reduction <maximumf>, %87, %cst_40 [1] : vector<8x128xf32> to vector<8xf32>
      %89 = vector.shape_cast %88 : vector<8xf32> to vector<8x1xf32>
      %90 = vector.broadcast %89 : vector<8x1xf32> to vector<8x128xf32>
      %91 = arith.subf %87, %90 : vector<8x128xf32>
      %92 = math.exp %91 : vector<8x128xf32>
      %cst_41 = arith.constant 0.000000e+00 : f32
      %93 = vector.broadcast %cst_41 : f32 to vector<8x128xf32>
      %94 = arith.select %85, %92, %93 : vector<8x128xi1>, vector<8x128xf32>
      %cst_42 = arith.constant dense<0.000000e+00> : vector<8xf32>
      %95 = vector.multi_reduction <add>, %94, %cst_42 [1] : vector<8x128xf32> to vector<8xf32>
      %96 = vector.shape_cast %95 : vector<8xf32> to vector<8x1xf32>
      %97 = math.log %96 : vector<8x1xf32>
      %98 = vector.broadcast %97 : vector<8x1xf32> to vector<8x128xf32>
      %99 = arith.subf %91, %98 : vector<8x128xf32>
      %c0_43 = arith.constant 0 : index
      %c0_44 = arith.constant 0 : index
      %100 = vector.load %arg6[%c0_43, %c0_44] : memref<8x128xf32, #tpu.memory_space<vmem>>, vector<8x128xf32>
      tpu.vector_store %arg6[%c0_43, %c0_44], %99 {strides = array<i32>} : memref<8x128xf32, #tpu.memory_space<vmem>>, vector<8x128xf32>,
    } else {
    }
    return
  }
  func.func @transform_0(%arg0: i32) -> (i32, i32, i32) {
    %c0_i32 = arith.constant 0 : i32
    %c0_i32_0 = arith.constant 0 : i32
    %c0_i32_1 = arith.constant 0 : i32
    %c0_i32_2 = arith.constant 0 : i32
    return %c0_i32, %c0_i32_0, %c0_i32_1 : i32, i32, i32
  }
  func.func @transform_1(%arg0: i32) -> (i32, i32) {
    %c0_i32 = arith.constant 0 : i32
    %c0_i32_0 = arith.constant 0 : i32
    return %arg0, %c0_i32 : i32, i32
  }
  func.func @transform_2(%arg0: i32) -> (i32, i32) {
    %c0_i32 = arith.constant 0 : i32
    %c0_i32_0 = arith.constant 0 : i32
    %c0_i32_1 = arith.constant 0 : i32
    return %c0_i32, %c0_i32_0 : i32, i32
  }
  func.func @transform_3(%arg0: i32) -> (i32, i32) {
    %c0_i32 = arith.constant 0 : i32
    %c0_i32_0 = arith.constant 0 : i32
    %c0_i32_1 = arith.constant 0 : i32
    return %c0_i32, %c0_i32_0 : i32, i32
  }
  func.func @transform_4(%arg0: i32) -> (i32, i32) {
    %c0_i32 = arith.constant 0 : i32
    %c0_i32_0 = arith.constant 0 : i32
    %c0_i32_1 = arith.constant 0 : i32
    return %c0_i32, %c0_i32_0 : i32, i32
  }
  func.func @transform_5(%arg0: i32) -> (i32, i32) {
    %c0_i32 = arith.constant 0 : i32
    %c0_i32_0 = arith.constant 0 : i32
    %c0_i32_1 = arith.constant 0 : i32
    return %c0_i32, %c0_i32_0 : i32, i32
  }
}

</mosaic_0001>

<llo_original>
// kernel: tpu_custom_call.1
$region0: #{tpu_custom_call.1}
  #allocation0 [shape = 'u32[]', space=smem, size = 0x4, offset = 0x4, fixed_abs, tag = 'smem constant byte address 0x4 - core index']
  #allocation1 [shape = 'u32[144,128]{1,0:T(1,128)}', space=vmem, size = 0x12000, scoped, tag = 'internal scratch']
  #allocation2 [shape = 'f32[8,128]{1,0:T(8,128)}', space=vmem, size = 0x1000, scoped, tag = 'scratch operand']
  %s0 = inlined_call_operand.hbm [shape: bf16[2,8,128], index: 0, kind: input, shape index: {}]
  %s1 = inlined_call_operand.hbm [shape: bf16[256,128], index: 1, kind: input, shape index: {}]
  %s2 = inlined_call_operand.hbm [shape: f32[4,128], index: 2, kind: input, shape index: {}]
  %s3 = inlined_call_operand.hbm [shape: bf16[128,128], index: 3, kind: input, shape index: {}]
  %s4 = inlined_call_operand.hbm [shape: bf16[128,128], index: 4, kind: input, shape index: {}]
  %s5 = inlined_call_operand.hbm [shape: f32[8,128], index: 5, kind: output, shape index: {}]
  %s6 = sld [smem:[#allocation0]]
  $region81: #{tpu_custom_call.1} parent=0
    _
  %s8 = ssub.s32 1, %s6
  %s9 = scalar_select 0, %s8, %s6
  $region1: #{tpu_custom_call.1} parent=0
    #allocation3 [shape = 'u8[4096]{0}', space=vmem, size = 0x1000, scoped, tag = 'input window, operand 0, single buffered']
    #allocation4 [shape = 's32[2]{0}', space=sflag, size = 0x8, scoped, tag = 'scoped memory for tpu_custom_call.1']
    #allocation5 [shape = 's32[2]{0}', space=sflag, size = 0x8, scoped, tag = 'scoped memory for tpu_custom_call.1']
    #allocation6 [shape = 'u8[65536]{0}', space=vmem, size = 0x10000, scoped, tag = 'input window, operand 1']
    #allocation7 [shape = 's32[2]{0}', space=sflag, size = 0x8, scoped, tag = 'scoped memory for tpu_custom_call.1']
    #allocation8 [shape = 'u8[2048]{0}', space=vmem, size = 0x800, scoped, tag = 'input window, operand 2, single buffered']
    #allocation9 [shape = 'u8[32768]{0}', space=vmem, size = 0x8000, scoped, tag = 'input window, operand 3, single buffered']
    #allocation10 [shape = 's32[1]{0}', space=sflag, size = 0x4, scoped, tag = 'scoped memory for tpu_custom_call.1']
    #allocation11 [shape = 'u8[32768]{0}', space=vmem, size = 0x8000, scoped, tag = 'input window, operand 4, single buffered']
    #allocation12 [shape = 'u8[4096]{0}', space=vmem, size = 0x1000, scoped, tag = 'output window, operand 0, single buffered']
    %10 = vsyncpa [#allocation4], 0
    %11 = vsyncpa [#allocation7], 0
    %s12 = scalar_lea.sflag [#allocation7], 1
    %13 = vsyncpa %s12, 0
    %14 = vsyncpa [#allocation10], 0
    %15 = vsyncpa [#allocation5], 0
    loop: start=0, step=1, limit=4
    $region2: #{tpu_custom_call.1} parent=1 // loop_pre_header
      _
    $region3: #{tpu_custom_call.1} parent=1 // loop_header
      %s17 = sphi 0, %s21
      %p18 = scmp.ge.s32.totalorder %s17, 4
      %s25 = sphi 0, %s25
      %s27 = sphi 0, %s25
      %s28 = sphi 0, %s27
      %s42 = sphi 0, %s28
      %s48 = sphi 0, %s50
      %s51 = sphi 0, %s48
      %s52 = sphi 0, %s51
      %s68 = sphi 0, %s52
      %s72 = sphi 0, %s72
      %s74 = sphi 0, %s72
      %s75 = sphi 0, %s74
      %s89 = sphi 0, %s75
      %s93 = sphi 0, %s93
      %s95 = sphi 0, %s93
      %s96 = sphi 0, %s95
      %s110 = sphi 0, %s96
      %s114 = sphi 0, %s114
      %s116 = sphi 0, %s114
      %s117 = sphi 0, %s116
      %s131 = sphi 0, %s117
      %s135 = sphi 0, %s135
      %s137 = sphi 0, %s135
      %s138 = sphi 0, %s137
      %s152 = sphi 0, %s138
    $region4: #{tpu_custom_call.1} parent=1 // loop_header_branch
      %20 = sbr.rel (%p18) target = $region8
    $region5: #{tpu_custom_call.1} parent=1 // loop_body
      %s22 = ssub.s32 %s17, 1
      %s23 = ssub.s32 %s17, 2
      %s24 = sadd.s32 %s17, 1
      %s26 = sadd.s32 %s25, 1
      %p29 = scmp.eq.s32.totalorder %s17, 1
      %p30 = scmp.ne.s32.totalorder %s25, %s27
      %p31 = scmp.eq.s32.totalorder %s17, 0
      %p32 = por %p30, %p31
      %p33 = scmp.ne.s32.totalorder %s25, %s27
      %p34 = scmp.eq.s32.totalorder %s22, 1
      %p35 = por %p33, %p34
      %p36 = scmp.ne.s32.totalorder %s27, %s28
      %p37 = scmp.eq.s32.totalorder %s22, 0
      %p38 = por %p36, %p37
      %p39 = scmp.ne.s32.totalorder %s27, %s28
      %p40 = scmp.eq.s32.totalorder %s23, 1
      %p41 = por %p39, %p40
      %p43 = scmp.ne.s32.totalorder %s28, %s42
      %p44 = scmp.eq.s32.totalorder %s23, 0
      %p45 = por %p43, %p44
      %s46 = ssub.s32 %s17, %s24
      %p47 = scmp.eq.s32.totalorder %s46, 0
      %s49 = sadd.s32 %s48, 1
      %s50 = scalar_select %p47, %s48, %s49
      %p53 = pneg %p47
      %p54 = scmp.eq.s32.totalorder %s17, 1
      %p55 = por %p53, %p54
      %p56 = scmp.ne.s32.totalorder %s48, %s51
      %p57 = scmp.eq.s32.totalorder %s17, 0
      %p58 = por %p56, %p57
      %p59 = scmp.ne.s32.totalorder %s48, %s51
      %p60 = scmp.eq.s32.totalorder %s22, 1
      %p61 = por %p59, %p60
      %p62 = scmp.ne.s32.totalorder %s51, %s52
      %p63 = scmp.eq.s32.totalorder %s22, 0
      %p64 = por %p62, %p63
      %p65 = scmp.ne.s32.totalorder %s51, %s52
      %p66 = scmp.eq.s32.totalorder %s23, 1
      %p67 = por %p65, %p66
      %p69 = scmp.ne.s32.totalorder %s52, %s68
      %p70 = scmp.eq.s32.totalorder %s23, 0
      %p71 = por %p69, %p70
      %s73 = sadd.s32 %s72, 1
      %p76 = scmp.eq.s32.totalorder %s17, 1
      %p77 = scmp.ne.s32.totalorder %s72, %s74
      %p78 = scmp.eq.s32.totalorder %s17, 0
      %p79 = por %p77, %p78
      %p80 = scmp.ne.s32.totalorder %s72, %s74
      %p81 = scmp.eq.s32.totalorder %s22, 1
      %p82 = por %p80, %p81
      %p83 = scmp.ne.s32.totalorder %s74, %s75
      %p84 = scmp.eq.s32.totalorder %s22, 0
      %p85 = por %p83, %p84
      %p86 = scmp.ne.s32.totalorder %s74, %s75
      %p87 = scmp.eq.s32.totalorder %s23, 1
      %p88 = por %p86, %p87
      %p90 = scmp.ne.s32.totalorder %s75, %s89
      %p91 = scmp.eq.s32.totalorder %s23, 0
      %p92 = por %p90, %p91
      %s94 = sadd.s32 %s93, 1
      %p97 = scmp.eq.s32.totalorder %s17, 1
      %p98 = scmp.ne.s32.totalorder %s93, %s95
      %p99 = scmp.eq.s32.totalorder %s17, 0
      %p100 = por %p98, %p99
      %p101 = scmp.ne.s32.totalorder %s93, %s95
      %p102 = scmp.eq.s32.totalorder %s22, 1
      %p103 = por %p101, %p102
      %p104 = scmp.ne.s32.totalorder %s95, %s96
      %p105 = scmp.eq.s32.totalorder %s22, 0
      %p106 = por %p104, %p105
      %p107 = scmp.ne.s32.totalorder %s95, %s96
      %p108 = scmp.eq.s32.totalorder %s23, 1
      %p109 = por %p107, %p108
      %p111 = scmp.ne.s32.totalorder %s96, %s110
      %p112 = scmp.eq.s32.totalorder %s23, 0
      %p113 = por %p111, %p112
      %s115 = sadd.s32 %s114, 1
      %p118 = scmp.eq.s32.totalorder %s17, 1
      %p119 = scmp.ne.s32.totalorder %s114, %s116
      %p120 = scmp.eq.s32.totalorder %s17, 0
      %p121 = por %p119, %p120
      %p122 = scmp.ne.s32.totalorder %s114, %s116
      %p123 = scmp.eq.s32.totalorder %s22, 1
      %p124 = por %p122, %p123
      %p125 = scmp.ne.s32.totalorder %s116, %s117
      %p126 = scmp.eq.s32.totalorder %s22, 0
      %p127 = por %p125, %p126
      %p128 = scmp.ne.s32.totalorder %s116, %s117
      %p129 = scmp.eq.s32.totalorder %s23, 1
      %p130 = por %p128, %p129
      %p132 = scmp.ne.s32.totalorder %s117, %s131
      %p133 = scmp.eq.s32.totalorder %s23, 0
      %p134 = por %p132, %p133
      %s136 = sadd.s32 %s135, 1
      %p139 = scmp.eq.s32.totalorder %s17, 1
      %p140 = scmp.ne.s32.totalorder %s135, %s137
      %p141 = scmp.eq.s32.totalorder %s17, 0
      %p142 = por %p140, %p141
      %p143 = scmp.ne.s32.totalorder %s135, %s137
      %p144 = scmp.eq.s32.totalorder %s22, 1
      %p145 = por %p143, %p144
      %p146 = scmp.ne.s32.totalorder %s137, %s138
      %p147 = scmp.eq.s32.totalorder %s22, 0
      %p148 = por %p146, %p147
      %p149 = scmp.ne.s32.totalorder %s137, %s138
      %p150 = scmp.eq.s32.totalorder %s23, 1
      %p151 = por %p149, %p150
      %p153 = scmp.ne.s32.totalorder %s138, %s152
      %p154 = scmp.eq.s32.totalorder %s23, 0
      %p155 = por %p153, %p154
      %p156 = scmp.le.s32.totalorder 1, %s17
      %p157 = scmp.lt.s32.totalorder %s17, 3
      %p158 = pnand %p156, %p157
      %p159 = pneg %p158
      // Predicated region
      $region9: #{tpu_custom_call.1} parent=5 // pred_check
        _
      $region10: #{tpu_custom_call.1} parent=5 // pred_check_branch
        %161 = sbr.rel (%p158) target = $region12
      $region11: #{tpu_custom_call.1} parent=5 // pred_region
        %s162 = ssub.s32 %s17, 1
        // Predicated region
        $region13: #{tpu_custom_call.1} parent=11 // pred_check
          %p163 = pneg %p38
        $region14: #{tpu_custom_call.1} parent=11 // pred_check_branch
          %165 = sbr.rel (%p163) target = $region16
        $region15: #{tpu_custom_call.1} parent=11 // pred_region
          %s167 = ssub.s32 128, 128
          %168 = vsyncadd [#allocation4], %s167
          %s169 = sshll.u32 [#allocation3], 4
          %s170 = int_to_ptr.vmem [resolvable:$true] %s169
          %175 = dma.hbm_to_vmem [thread:$0]  %s0, 128, %s170, [#allocation4], 64, 64, 4
        $region16: #{tpu_custom_call.1} parent=11 // pred_fallthru
          _
        // Predicated region
        $region17: #{tpu_custom_call.1} parent=11 // pred_check
          %p176 = pneg %p85
        $region18: #{tpu_custom_call.1} parent=11 // pred_check_branch
          %178 = sbr.rel (%p176) target = $region20
        $region19: #{tpu_custom_call.1} parent=11 // pred_region
          %s180 = ssub.s32 64, 64
          %181 = vsyncadd [#allocation7], %s180
          %s183 = sshll.u32 [#allocation8], 4
          %s184 = int_to_ptr.vmem [resolvable:$true] %s183
          %186 = dma.hbm_to_vmem [thread:$0]  %s2, 64, %s184, [#allocation7]
        $region20: #{tpu_custom_call.1} parent=11 // pred_fallthru
          _
        // Predicated region
        $region21: #{tpu_custom_call.1} parent=11 // pred_check
          %p187 = pneg %p106
        $region22: #{tpu_custom_call.1} parent=11 // pred_check_branch
          %189 = sbr.rel (%p187) target = $region24
        $region23: #{tpu_custom_call.1} parent=11 // pred_region
          %s191 = ssub.s32 1024, 1024
          %192 = vsyncadd [#allocation10], %s191
          %s193 = sshll.u32 [#allocation9], 4
          %s194 = int_to_ptr.vmem [resolvable:$true] %s193
          %199 = dma.hbm_to_vmem [thread:$0]  %s3, 1024, %s194, [#allocation10], 64, 64, 4
        $region24: #{tpu_custom_call.1} parent=11 // pred_fallthru
          _
        // Predicated region
        $region25: #{tpu_custom_call.1} parent=11 // pred_check
          %p200 = pneg %p127
        $region26: #{tpu_custom_call.1} parent=11 // pred_check_branch
          %202 = sbr.rel (%p200) target = $region28
        $region27: #{tpu_custom_call.1} parent=11 // pred_region
          %s204 = ssub.s32 1024, 1024
          %205 = vsyncadd [#allocation10], %s204
          %s206 = sshll.u32 [#allocation11], 4
          %s207 = int_to_ptr.vmem [resolvable:$true] %s206
          %212 = dma.hbm_to_vmem [thread:$0]  %s4, 1024, %s207, [#allocation10], 64, 64, 4
        $region28: #{tpu_custom_call.1} parent=11 // pred_fallthru
          _
      $region12: #{tpu_custom_call.1} parent=5 // pred_fallthru
        _
      %p213 = scmp.lt.s32.totalorder %s17, 2
      // Predicated region
      $region29: #{tpu_custom_call.1} parent=5 // pred_check
        %p214 = pneg %p213
      $region30: #{tpu_custom_call.1} parent=5 // pred_check_branch
        %216 = sbr.rel (%p214) target = $region32
      $region31: #{tpu_custom_call.1} parent=5 // pred_region
        // Predicated region
        $region33: #{tpu_custom_call.1} parent=31 // pred_check
          %p217 = pneg %p58
        $region34: #{tpu_custom_call.1} parent=31 // pred_check_branch
          %219 = sbr.rel (%p217) target = $region36
        $region35: #{tpu_custom_call.1} parent=31 // pred_region
          %s220 = sand.u32 %s17, 1
          %s221 = scalar_lea.sflag [#allocation7], %s220
          %s222 = sand.u32 %s48, 1
          %s223 = smul.addr %s222, 64
          %s224 = scalar_lea.vmem [#allocation6], %s223
          %s225 = smul.u32 16, %s17
          %s227 = ssub.s32 1024, 1024
          %228 = vsyncadd %s221, %s227
          %s229 = smul.addr %s225, 64
          %s230 = scalar_lea.hbm %s1, %s229
          %s231 = sshll.u32 %s224, 4
          %s232 = int_to_ptr.vmem [resolvable:$true] %s231
          %237 = dma.hbm_to_vmem [thread:$0]  %s230, 1024, %s232, %s221, 64, 64, 4
        $region36: #{tpu_custom_call.1} parent=31 // pred_fallthru
          _
      $region32: #{tpu_custom_call.1} parent=5 // pred_fallthru
        _
      %p238 = scmp.le.s32.totalorder 1, %s17
      %p239 = scmp.lt.s32.totalorder %s17, 3
      %p240 = pnand %p238, %p239
      %p241 = pneg %p240
      // Predicated region
      $region37: #{tpu_custom_call.1} parent=5 // pred_check
        _
      $region38: #{tpu_custom_call.1} parent=5 // pred_check_branch
        %243 = sbr.rel (%p240) target = $region40
      $region39: #{tpu_custom_call.1} parent=5 // pred_region
        %s244 = ssub.s32 %s17, 1
        // Predicated region
        $region41: #{tpu_custom_call.1} parent=39 // pred_check
          %p245 = pneg %p38
        $region42: #{tpu_custom_call.1} parent=39 // pred_check_branch
          %247 = sbr.rel (%p245) target = $region44
        $region43: #{tpu_custom_call.1} parent=39 // pred_region
          %248 = dma.done [#allocation4], 128
        $region44: #{tpu_custom_call.1} parent=39 // pred_fallthru
          _
        %s249 = sand.u32 %s22, 1
        %s250 = scalar_lea.sflag [#allocation7], %s249
        %s251 = sand.u32 %s51, 1
        %s252 = smul.addr %s251, 64
        %s253 = scalar_lea.vmem [#allocation6], %s252
        // Predicated region
        $region45: #{tpu_custom_call.1} parent=39 // pred_check
          %p254 = pneg %p64
        $region46: #{tpu_custom_call.1} parent=39 // pred_check_branch
          %256 = sbr.rel (%p254) target = $region48
        $region47: #{tpu_custom_call.1} parent=39 // pred_region
          %257 = dma.done %s250, 1024
        $region48: #{tpu_custom_call.1} parent=39 // pred_fallthru
          _
        // Predicated region
        $region49: #{tpu_custom_call.1} parent=39 // pred_check
          %p258 = pneg %p85
        $region50: #{tpu_custom_call.1} parent=39 // pred_check_branch
          %260 = sbr.rel (%p258) target = $region52
        $region51: #{tpu_custom_call.1} parent=39 // pred_region
          %261 = dma.done [#allocation7], 64
        $region52: #{tpu_custom_call.1} parent=39 // pred_fallthru
          _
        // Predicated region
        $region53: #{tpu_custom_call.1} parent=39 // pred_check
          %p262 = pneg %p106
        $region54: #{tpu_custom_call.1} parent=39 // pred_check_branch
          %264 = sbr.rel (%p262) target = $region56
        $region55: #{tpu_custom_call.1} parent=39 // pred_region
          %265 = dma.done [#allocation10], 1024
        $region56: #{tpu_custom_call.1} parent=39 // pred_fallthru
          _
        // Predicated region
        $region57: #{tpu_custom_call.1} parent=39 // pred_check
          %p266 = pneg %p127
        $region58: #{tpu_custom_call.1} parent=39 // pred_check_branch
          %268 = sbr.rel (%p266) target = $region60
        $region59: #{tpu_custom_call.1} parent=39 // pred_region
          %269 = dma.done [#allocation10], 1024
        $region60: #{tpu_custom_call.1} parent=39 // pred_fallthru
          _
        %p270 = pneg %p38
        %p271 = pneg %p35
        %s272 = sand.u32 %s22, 1
        %s273 = scalar_lea.sflag [#allocation7], %s272
        %s274 = sand.u32 %s51, 1
        %s275 = smul.addr %s274, 64
        %s276 = scalar_lea.vmem [#allocation6], %s275
        %p277 = pneg %p64
        %p278 = pneg %p61
        %p279 = pneg %p85
        %p280 = pneg %p82
        %p281 = pneg %p106
        %p282 = pneg %p103
        %p283 = pneg %p127
        %p284 = pneg %p124
        %p285 = pneg %p148
        %p286 = pneg %p145
        %s287 = smul.u32 16, %s22
        %p289 = scmp.eq.s32.totalorder %s22, 0
        // Predicated region
        $region61: #{tpu_custom_call.1} parent=39 // pred_check
          %p290 = pneg %p289
        $region62: #{tpu_custom_call.1} parent=39 // pred_check_branch
          %292 = sbr.rel (%p290) target = $region64
        $region63: #{tpu_custom_call.1} parent=39 // pred_region
          %293 = vst [vmem:[#allocation2] sm:$0xff] 0.0
        $region64: #{tpu_custom_call.1} parent=39 // pred_fallthru
          _
        %s294 = smul.addr %s22, 4
        %s295 = scalar_lea.vmem [#allocation3], %s294
        %v296 = vld [vmem:[%s295] sm:$0xf]
        %v297 = vld [vmem:[#allocation2] sm:$0xff]
        %v298 = vld [vmem:[%s253] sm:$0xf]
        %v299 = vld [vmem:[%s253 + $0x4] sm:$0xf]
        %v300 = vld [vmem:[%s253 + $0x8] sm:$0xf]
        %v301 = vld [vmem:[%s253 + $0xc] sm:$0xf]
        %v302 = vld [vmem:[%s253 + $0x10] sm:$0xf]
        %v303 = vld [vmem:[%s253 + $0x14] sm:$0xf]
        %v304 = vld [vmem:[%s253 + $0x18] sm:$0xf]
        %v305 = vld [vmem:[%s253 + $0x1c] sm:$0xf]
        %v306 = vld [vmem:[%s253 + $0x20] sm:$0xf]
        %v307 = vld [vmem:[%s253 + $0x24] sm:$0xf]
        %v308 = vld [vmem:[%s253 + $0x28] sm:$0xf]
        %v309 = vld [vmem:[%s253 + $0x2c] sm:$0xf]
        %v310 = vld [vmem:[%s253 + $0x30] sm:$0xf]
        %v311 = vld [vmem:[%s253 + $0x34] sm:$0xf]
        %v312 = vld [vmem:[%s253 + $0x38] sm:$0xf]
        %v313 = vld [vmem:[%s253 + $0x3c] sm:$0xf]
        %v330 = vunpack.c.l.b16 %v298
        %v331 = vunpack.c.l.b16 %v299
        %v332 = vunpack.c.l.b16 %v300
        %v333 = vunpack.c.l.b16 %v301
        %v334 = vunpack.c.l.b16 %v302
        %v335 = vunpack.c.l.b16 %v303
        %v336 = vunpack.c.l.b16 %v304
        %v337 = vunpack.c.l.b16 %v305
        %v338 = vunpack.c.l.b16 %v306
        %v339 = vunpack.c.l.b16 %v307
        %v340 = vunpack.c.l.b16 %v308
        %v341 = vunpack.c.l.b16 %v309
        %v342 = vunpack.c.l.b16 %v310
        %v343 = vunpack.c.l.b16 %v311
        %v344 = vunpack.c.l.b16 %v312
        %v345 = vunpack.c.l.b16 %v313
        %v346 = vpack.c.b16 %v331, %v330
        %v347 = vpack.c.b16 %v333, %v332
        %v348 = vpack.c.b16 %v335, %v334
        %v349 = vpack.c.b16 %v337, %v336
        %v350 = vpack.c.b16 %v339, %v338
        %v351 = vpack.c.b16 %v341, %v340
        %v352 = vpack.c.b16 %v343, %v342
        %v353 = vpack.c.b16 %v345, %v344
        %362 = vmatprep.subr.bf16.mxu0 0
        %363 = vmatpush1.bf16.msra.mxu0 %v353
        %364 = vmatprep.subr.bf16.mxu0 0
        %365 = vmatpush1.bf16.msra.mxu0 %v352
        %366 = vmatprep.subr.bf16.mxu0 0
        %367 = vmatpush1.bf16.msra.mxu0 %v351
        %368 = vmatprep.subr.bf16.mxu0 0
        %369 = vmatpush1.bf16.msra.mxu0 %v350
        %370 = vmatprep.subr.bf16.mxu0 0
        %371 = vmatpush1.bf16.msra.mxu0 %v349
        %372 = vmatprep.subr.bf16.mxu0 0
        %373 = vmatpush1.bf16.msra.mxu0 %v348
        %374 = vmatprep.subr.bf16.mxu0 0
        %375 = vmatpush1.bf16.msra.mxu0 %v347
        %376 = vmatprep.subr.bf16.mxu0 0
        %377 = vmatpush1.bf16.msra.mxu0 %v346
        %378 = vmatprep.subr.bf16.mxu0 0
        %379 = vmatpush2.bf16.msra.mxu0 0
        %380 = vmatprep.subr.bf16.mxu0 0
        %381 = vmatpush2.bf16.msra.mxu0 0
        %382 = vmatprep.subr.bf16.mxu0 0
        %383 = vmatpush2.bf16.msra.mxu0 0
        %384 = vmatprep.subr.bf16.mxu0 0
        %385 = vmatpush2.bf16.msra.mxu0 0
        %386 = vmatprep.subr.bf16.mxu0 0
        %387 = vmatpush2.bf16.msra.mxu0 0
        %388 = vmatprep.subr.bf16.mxu0 0
        %389 = vmatpush2.bf16.msra.mxu0 0
        %390 = vmatprep.subr.bf16.mxu0 0
        %391 = vmatpush2.bf16.msra.mxu0 0
        %392 = vmatprep.subr.bf16.mxu0 0
        %393 = vmatpush2.bf16.msra.mxu0 0
        %394 = vmatprep.mubr.bf16.mxu0 0
        %395 = vmatmul.mubr.bf16.gmra.mxu0 %v296
        %v396 = vpop.f32.mrf.mxu0
        %v397 = vadd.f32 0.0, %v396
        %v398 = vpop.f32.mrf.mxu0
        %v399 = vpop.f32.mrf.mxu0
        %v400 = vpop.f32.mrf.mxu0
        %401 = vdwg.mxu0
        %v402 = vadd.f32 %v297, %v397
        %403 = vst [vmem:[#allocation2] sm:$0xff] %v402
        %p404 = scmp.eq.s32.totalorder %s22, 1
        // Predicated region
        $region65: #{tpu_custom_call.1} parent=39 // pred_check
          %p405 = pneg %p404
        $region66: #{tpu_custom_call.1} parent=39 // pred_check_branch
          %407 = sbr.rel (%p405) target = $region68
        $region67: #{tpu_custom_call.1} parent=39 // pred_region
          %v408 = vld [vmem:[#allocation8] sm:$0x1]
          %v409 = vld [vmem:[#allocation8 + $0x1] sm:$0x1]
          %v410 = vld [vmem:[#allocation8 + $0x2] sm:$0x1]
          %v411 = vld [vmem:[#allocation8 + $0x3] sm:$0x1]
          %v412 = vld [vmem:[#allocation2] sm:$0xff]
          %v413 = vrot.slane %v412, 4
          %v414 = vadd.f32 %v412, %v413
          %v415 = vrot.slane %v414, 2
          %v416 = vadd.f32 %v414, %v415
          %v417 = vrot.slane %v416, 1
          %v418 = vadd.f32 %v416, %v417
          %v419 = vrcp.pop 8.0
          %v420 = vmul.f32 %v418, %v419
          %v421 = vsub.f32 %v412, %v420
          %v422 = vmul.f32 %v421, %v421
          %v423 = vrot.slane %v422, 4
          %v424 = vadd.f32 %v422, %v423
          %v425 = vrot.slane %v424, 2
          %v426 = vadd.f32 %v424, %v425
          %v427 = vrot.slane %v426, 1
          %v428 = vadd.f32 %v426, %v427
          %v429 = vmul.f32 %v428, %v419
          %v430 = vadd.f32 %v429, 1e-05
          %v431 = vrsqrt.pop %v430
          %v432 = vmul.f32 %v431, %v408
          %v433 = vlaneseq
          %v434 = vshrl.u32 %v433, 7
          %v435 = vsub.s32 0, %v434
          %v436 = vrot.slane %v432, %v435
          %v437 = vmul.f32 %v421, %v436
          %v438 = vlaneseq
          %v439 = vshrl.u32 %v438, 7
          %v440 = vsub.s32 0, %v439
          %v441 = vrot.slane %v409, %v440
          %v442 = vadd.f32 %v437, %v441
          %v443 = vmax.f32 %v442, 0.0
          %v444 = vpack.c.bf16 %v443, %v443
          %v445 = vld [vmem:[#allocation9] sm:$0xf]
          %v446 = vld [vmem:[#allocation9 + $0x4] sm:$0xf]
          %v447 = vld [vmem:[#allocation9 + $0x8] sm:$0xf]
          %v448 = vld [vmem:[#allocation9 + $0xc] sm:$0xf]
          %v449 = vld [vmem:[#allocation9 + $0x10] sm:$0xf]
          %v450 = vld [vmem:[#allocation9 + $0x14] sm:$0xf]
          %v451 = vld [vmem:[#allocation9 + $0x18] sm:$0xf]
          %v452 = vld [vmem:[#allocation9 + $0x1c] sm:$0xf]
          %v453 = vld [vmem:[#allocation9 + $0x20] sm:$0xf]
          %v454 = vld [vmem:[#allocation9 + $0x24] sm:$0xf]
          %v455 = vld [vmem:[#allocation9 + $0x28] sm:$0xf]
          %v456 = vld [vmem:[#allocation9 + $0x2c] sm:$0xf]
          %v457 = vld [vmem:[#allocation9 + $0x30] sm:$0xf]
          %v458 = vld [vmem:[#allocation9 + $0x34] sm:$0xf]
          %v459 = vld [vmem:[#allocation9 + $0x38] sm:$0xf]
          %v460 = vld [vmem:[#allocation9 + $0x3c] sm:$0xf]
          %v477 = vunpack.c.l.b16 %v445
          %v478 = vunpack.c.l.b16 %v446
          %v479 = vunpack.c.l.b16 %v447
          %v480 = vunpack.c.l.b16 %v448
          %v481 = vunpack.c.l.b16 %v449
          %v482 = vunpack.c.l.b16 %v450
          %v483 = vunpack.c.l.b16 %v451
          %v484 = vunpack.c.l.b16 %v452
          %v485 = vunpack.c.l.b16 %v453
          %v486 = vunpack.c.l.b16 %v454
          %v487 = vunpack.c.l.b16 %v455
          %v488 = vunpack.c.l.b16 %v456
          %v489 = vunpack.c.l.b16 %v457
          %v490 = vunpack.c.l.b16 %v458
          %v491 = vunpack.c.l.b16 %v459
          %v492 = vunpack.c.l.b16 %v460
          %v493 = vpack.c.b16 %v478, %v477
          %v494 = vpack.c.b16 %v480, %v479
          %v495 = vpack.c.b16 %v482, %v481
          %v496 = vpack.c.b16 %v484, %v483
          %v497 = vpack.c.b16 %v486, %v485
          %v498 = vpack.c.b16 %v488, %v487
          %v499 = vpack.c.b16 %v490, %v489
          %v500 = vpack.c.b16 %v492, %v491
          %509 = vmatprep.subr.bf16.mxu0 0
          %510 = vmatpush1.bf16.msra.mxu0 %v500
          %511 = vmatprep.subr.bf16.mxu0 0
          %512 = vmatpush1.bf16.msra.mxu0 %v499
          %513 = vmatprep.subr.bf16.mxu0 0
          %514 = vmatpush1.bf16.msra.mxu0 %v498
          %515 = vmatprep.subr.bf16.mxu0 0
          %516 = vmatpush1.bf16.msra.mxu0 %v497
          %517 = vmatprep.subr.bf16.mxu0 0
          %518 = vmatpush1.bf16.msra.mxu0 %v496
          %519 = vmatprep.subr.bf16.mxu0 0
          %520 = vmatpush1.bf16.msra.mxu0 %v495
          %521 = vmatprep.subr.bf16.mxu0 0
          %522 = vmatpush1.bf16.msra.mxu0 %v494
          %523 = vmatprep.subr.bf16.mxu0 0
          %524 = vmatpush1.bf16.msra.mxu0 %v493
          %525 = vmatprep.subr.bf16.mxu0 0
          %526 = vmatpush2.bf16.msra.mxu0 0
          %527 = vmatprep.subr.bf16.mxu0 0
          %528 = vmatpush2.bf16.msra.mxu0 0
          %529 = vmatprep.subr.bf16.mxu0 0
          %530 = vmatpush2.bf16.msra.mxu0 0
          %531 = vmatprep.subr.bf16.mxu0 0
          %532 = vmatpush2.bf16.msra.mxu0 0
          %533 = vmatprep.subr.bf16.mxu0 0
          %534 = vmatpush2.bf16.msra.mxu0 0
          %535 = vmatprep.subr.bf16.mxu0 0
          %536 = vmatpush2.bf16.msra.mxu0 0
          %537 = vmatprep.subr.bf16.mxu0 0
          %538 = vmatpush2.bf16.msra.mxu0 0
          %539 = vmatprep.subr.bf16.mxu0 0
          %540 = vmatpush2.bf16.msra.mxu0 0
          %541 = vmatprep.mubr.bf16.mxu0 0
          %542 = vmatmul.mubr.bf16.gmra.mxu0 %v444
          %v543 = vpop.f32.mrf.mxu0
          %v544 = vadd.f32 0.0, %v543
          %v545 = vpop.f32.mrf.mxu0
          %v546 = vpop.f32.mrf.mxu0
          %v547 = vpop.f32.mrf.mxu0
          %548 = vdwg.mxu0
          %v549 = vrot.slane %v544, 4
          %v550 = vadd.f32 %v544, %v549
          %v551 = vrot.slane %v550, 2
          %v552 = vadd.f32 %v550, %v551
          %v553 = vrot.slane %v552, 1
          %v554 = vadd.f32 %v552, %v553
          %v555 = vmul.f32 %v554, %v419
          %v556 = vsub.f32 %v544, %v555
          %v557 = vmul.f32 %v556, %v556
          %v558 = vrot.slane %v557, 4
          %v559 = vadd.f32 %v557, %v558
          %v560 = vrot.slane %v559, 2
          %v561 = vadd.f32 %v559, %v560
          %v562 = vrot.slane %v561, 1
          %v563 = vadd.f32 %v561, %v562
          %v564 = vmul.f32 %v563, %v419
          %v565 = vadd.f32 %v564, 1e-05
          %v566 = vrsqrt.pop %v565
          %v567 = vmul.f32 %v566, %v410
          %v568 = vlaneseq
          %v569 = vshrl.u32 %v568, 7
          %v570 = vsub.s32 0, %v569
          %v571 = vrot.slane %v567, %v570
          %v572 = vmul.f32 %v556, %v571
          %v573 = vlaneseq
          %v574 = vshrl.u32 %v573, 7
          %v575 = vsub.s32 0, %v574
          %v576 = vrot.slane %v411, %v575
          %v577 = vadd.f32 %v572, %v576
          %v578 = vmax.f32 %v577, 0.0
          %v579 = vpack.c.bf16 %v578, %v578
          %v580 = vld [vmem:[#allocation11] sm:$0xf]
          %v581 = vld [vmem:[#allocation11 + $0x4] sm:$0xf]
          %v582 = vld [vmem:[#allocation11 + $0x8] sm:$0xf]
          %v583 = vld [vmem:[#allocation11 + $0xc] sm:$0xf]
          %v584 = vld [vmem:[#allocation11 + $0x10] sm:$0xf]
          %v585 = vld [vmem:[#allocation11 + $0x14] sm:$0xf]
          %v586 = vld [vmem:[#allocation11 + $0x18] sm:$0xf]
          %v587 = vld [vmem:[#allocation11 + $0x1c] sm:$0xf]
          %v588 = vld [vmem:[#allocation11 + $0x20] sm:$0xf]
          %v589 = vld [vmem:[#allocation11 + $0x24] sm:$0xf]
          %v590 = vld [vmem:[#allocation11 + $0x28] sm:$0xf]
          %v591 = vld [vmem:[#allocation11 + $0x2c] sm:$0xf]
          %v592 = vld [vmem:[#allocation11 + $0x30] sm:$0xf]
          %v593 = vld [vmem:[#allocation11 + $0x34] sm:$0xf]
          %v594 = vld [vmem:[#allocation11 + $0x38] sm:$0xf]
          %v595 = vld [vmem:[#allocation11 + $0x3c] sm:$0xf]
          %v612 = vunpack.c.l.b16 %v580
          %v613 = vunpack.c.l.b16 %v581
          %v614 = vunpack.c.l.b16 %v582
          %v615 = vunpack.c.l.b16 %v583
          %v616 = vunpack.c.l.b16 %v584
          %v617 = vunpack.c.l.b16 %v585
          %v618 = vunpack.c.l.b16 %v586
          %v619 = vunpack.c.l.b16 %v587
          %v620 = vunpack.c.l.b16 %v588
          %v621 = vunpack.c.l.b16 %v589
          %v622 = vunpack.c.l.b16 %v590
          %v623 = vunpack.c.l.b16 %v591
          %v624 = vunpack.c.l.b16 %v592
          %v625 = vunpack.c.l.b16 %v593
          %v626 = vunpack.c.l.b16 %v594
          %v627 = vunpack.c.l.b16 %v595
          %v628 = vpack.c.b16 %v613, %v612
          %v629 = vpack.c.b16 %v615, %v614
          %v630 = vpack.c.b16 %v617, %v616
          %v631 = vpack.c.b16 %v619, %v618
          %v632 = vpack.c.b16 %v621, %v620
          %v633 = vpack.c.b16 %v623, %v622
          %v634 = vpack.c.b16 %v625, %v624
          %v635 = vpack.c.b16 %v627, %v626
          %644 = vmatprep.subr.bf16.mxu0 0
          %645 = vmatpush1.bf16.msra.mxu0 %v635
          %646 = vmatprep.subr.bf16.mxu0 0
          %647 = vmatpush1.bf16.msra.mxu0 %v634
          %648 = vmatprep.subr.bf16.mxu0 0
          %649 = vmatpush1.bf16.msra.mxu0 %v633
          %650 = vmatprep.subr.bf16.mxu0 0
          %651 = vmatpush1.bf16.msra.mxu0 %v632
          %652 = vmatprep.subr.bf16.mxu0 0
          %653 = vmatpush1.bf16.msra.mxu0 %v631
          %654 = vmatprep.subr.bf16.mxu0 0
          %655 = vmatpush1.bf16.msra.mxu0 %v630
          %656 = vmatprep.subr.bf16.mxu0 0
          %657 = vmatpush1.bf16.msra.mxu0 %v629
          %658 = vmatprep.subr.bf16.mxu0 0
          %659 = vmatpush1.bf16.msra.mxu0 %v628
          %660 = vmatprep.subr.bf16.mxu0 0
          %661 = vmatpush2.bf16.msra.mxu0 0
          %662 = vmatprep.subr.bf16.mxu0 0
          %663 = vmatpush2.bf16.msra.mxu0 0
          %664 = vmatprep.subr.bf16.mxu0 0
          %665 = vmatpush2.bf16.msra.mxu0 0
          %666 = vmatprep.subr.bf16.mxu0 0
          %667 = vmatpush2.bf16.msra.mxu0 0
          %668 = vmatprep.subr.bf16.mxu0 0
          %669 = vmatpush2.bf16.msra.mxu0 0
          %670 = vmatprep.subr.bf16.mxu0 0
          %671 = vmatpush2.bf16.msra.mxu0 0
          %672 = vmatprep.subr.bf16.mxu0 0
          %673 = vmatpush2.bf16.msra.mxu0 0
          %674 = vmatprep.subr.bf16.mxu0 0
          %675 = vmatpush2.bf16.msra.mxu0 0
          %676 = vmatprep.mubr.bf16.mxu0 0
          %677 = vmatmul.mubr.bf16.gmra.mxu0 %v579
          %v678 = vpop.f32.mrf.mxu0
          %v679 = vadd.f32 0.0, %v678
          %v680 = vpop.f32.mrf.mxu0
          %v681 = vpop.f32.mrf.mxu0
          %v682 = vpop.f32.mrf.mxu0
          %683 = vdwg.mxu0
          %v684 = vrot.slane %v679, 4
          %v685 = vadd.f32 %v679, %v684
          %v686 = vrot.slane %v685, 2
          %v687 = vadd.f32 %v685, %v686
          %v688 = vrot.slane %v687, 1
          %v689 = vadd.f32 %v687, %v688
          %v690 = vmul.f32 %v689, %v419
          %v691 = vsub.f32 %v679, %v690
          %v692 = vmul.f32 %v691, %v691
          %v693 = vrot.slane %v692, 4
          %v694 = vadd.f32 %v692, %v693
          %v695 = vrot.slane %v694, 2
          %v696 = vadd.f32 %v694, %v695
          %v697 = vrot.slane %v696, 1
          %v698 = vadd.f32 %v696, %v697
          %v699 = vmul.f32 %v698, %v419
          %v700 = vadd.f32 %v699, 1e-05
          %v701 = vrsqrt.pop %v700
          %v702 = vmul.f32 %v691, %v701
          %v703 = vlaneseq
          %v704 = vand.u32 %v703, 127
          %vm705 = vcmp.lt.s32.totalorder %v704, 35
          %v706 = vsel %vm705, %v702, -1e+30
          %707 = vmax.xlane.f32.xlu0 %v706
          %v708 = vpop.xlane.xlu0 %707
          %v709 = vsub.f32 %v706, %v708
          %v710 = vmul.f32 %v709, 1.442695
          %v711 = vpow.pop %v710
          %v712 = vsel %vm705, %v711, 0.0
          %713 = vadd.xlane.f32.xlu0 %v712
          %v714 = vpop.xlane.xlu0 %713
          %v715 = vlog2.pop %v714
          %v716 = vmul.f32 %v715, 0.6931472
          %v717 = vsub.f32 %v709, %v716
          %718 = vst [vmem:[#allocation12] sm:$0xff] %v717
        $region68: #{tpu_custom_call.1} parent=39 // pred_fallthru
          _
        // Predicated region
        $region69: #{tpu_custom_call.1} parent=39 // pred_check
          %p719 = pneg %p145
        $region70: #{tpu_custom_call.1} parent=39 // pred_check_branch
          %721 = sbr.rel (%p719) target = $region72
        $region71: #{tpu_custom_call.1} parent=39 // pred_region
          %s723 = ssub.s32 128, 128
          %724 = vsyncadd [#allocation5], %s723
          %s726 = sshll.u32 [#allocation12], 4
          %s727 = int_to_ptr.vmem [resolvable:$true] %s726
          %729 = dma.vmem_to_hbm [thread:$0]  %s727, 128, %s5, [#allocation5]
        $region72: #{tpu_custom_call.1} parent=39 // pred_fallthru
          _
        // Predicated region
        $region73: #{tpu_custom_call.1} parent=39 // pred_check
          %p730 = pneg %p145
        $region74: #{tpu_custom_call.1} parent=39 // pred_check_branch
          %732 = sbr.rel (%p730) target = $region76
        $region75: #{tpu_custom_call.1} parent=39 // pred_region
          %733 = dma.done [#allocation5], 128
        $region76: #{tpu_custom_call.1} parent=39 // pred_fallthru
          _
      $region40: #{tpu_custom_call.1} parent=5 // pred_fallthru
        _
      %p734 = scmp.le.s32.totalorder 2, %s17
      // Predicated region
      $region77: #{tpu_custom_call.1} parent=5 // pred_check
        %p735 = pneg %p734
      $region78: #{tpu_custom_call.1} parent=5 // pred_check_branch
        %737 = sbr.rel (%p735) target = $region80
      $region79: #{tpu_custom_call.1} parent=5 // pred_region
        %s738 = ssub.s32 %s17, 2
      $region80: #{tpu_custom_call.1} parent=5 // pred_fallthru
        _
    $region6: #{tpu_custom_call.1} parent=1 // loop_footer
      %s21 = sadd.s32 1, %s17
    $region7: #{tpu_custom_call.1} parent=1 // loop_footer_branch
      %16 = sbr.rel target = $region3
    $region8: #{tpu_custom_call.1} parent=1 // loop_exit
      _
    %739 = vsyncpa [#allocation4], 1
    %s740 = scalar_lea.sflag [#allocation4], 1
    %741 = vsyncpa %s740, 1
    %742 = vsyncpa [#allocation7], 1
    %s743 = scalar_lea.sflag [#allocation7], 1
    %744 = vsyncpa %s743, 1
    %745 = vsyncpa [#allocation10], 1
    %746 = vsyncpa [#allocation5], 1
    %s747 = scalar_lea.sflag [#allocation5], 1
    %748 = vsyncpa %s747, 1

// kernel: tpu_custom_call.1
$region0: #{tpu_custom_call.1}
  #allocation0 [shape = 'u32[]', space=smem, size = 0x4, offset = 0x4, fixed_abs, tag = 'smem constant byte address 0x4 - core index']
  #allocation1 [shape = 'u32[144,128]{1,0:T(1,128)}', space=vmem, size = 0x12000, scoped, tag = 'internal scratch']
  #allocation2 [shape = 'f32[8,128]{1,0:T(8,128)}', space=vmem, size = 0x1000, scoped, tag = 'scratch operand']
  %s0 = inlined_call_operand.hbm [shape: bf16[2,8,128], index: 0, kind: input, shape index: {}]
  %s1 = inlined_call_operand.hbm [shape: bf16[256,128], index: 1, kind: input, shape index: {}]
  %s2 = inlined_call_operand.hbm [shape: f32[4,128], index: 2, kind: input, shape index: {}]
  %s3 = inlined_call_operand.hbm [shape: bf16[128,128], index: 3, kind: input, shape index: {}]
  %s4 = inlined_call_operand.hbm [shape: bf16[128,128], index: 4, kind: input, shape index: {}]
  %s5 = inlined_call_operand.hbm [shape: f32[8,128], index: 5, kind: output, shape index: {}]
  %s6 = sld [smem:[#allocation0]]
  $region81: #{tpu_custom_call.1} parent=0
    _
  %s8 = ssub.s32 1, %s6
  %s9 = scalar_select 0, %s8, %s6
  $region1: #{tpu_custom_call.1} parent=0
    #allocation3 [shape = 'u8[4096]{0}', space=vmem, size = 0x1000, scoped, tag = 'input window, operand 0, single buffered']
    #allocation4 [shape = 's32[2]{0}', space=sflag, size = 0x8, scoped, tag = 'scoped memory for tpu_custom_call.1']
    #allocation5 [shape = 's32[2]{0}', space=sflag, size = 0x8, scoped, tag = 'scoped memory for tpu_custom_call.1']
    #allocation6 [shape = 'u8[65536]{0}', space=vmem, size = 0x10000, scoped, tag = 'input window, operand 1']
    #allocation7 [shape = 's32[2]{0}', space=sflag, size = 0x8, scoped, tag = 'scoped memory for tpu_custom_call.1']
    #allocation8 [shape = 'u8[2048]{0}', space=vmem, size = 0x800, scoped, tag = 'input window, operand 2, single buffered']
    #allocation9 [shape = 'u8[32768]{0}', space=vmem, size = 0x8000, scoped, tag = 'input window, operand 3, single buffered']
    #allocation10 [shape = 's32[1]{0}', space=sflag, size = 0x4, scoped, tag = 'scoped memory for tpu_custom_call.1']
    #allocation11 [shape = 'u8[32768]{0}', space=vmem, size = 0x8000, scoped, tag = 'input window, operand 4, single buffered']
    #allocation12 [shape = 'u8[4096]{0}', space=vmem, size = 0x1000, scoped, tag = 'output window, operand 0, single buffered']
    %10 = vsyncpa [#allocation4], 0
    %11 = vsyncpa [#allocation7], 0
    %s12 = scalar_lea.sflag [#allocation7], 1
    %13 = vsyncpa %s12, 0
    %14 = vsyncpa [#allocation10], 0
    %15 = vsyncpa [#allocation5], 0
    loop: start=0, step=1, limit=4
    $region2: #{tpu_custom_call.1} parent=1 // loop_pre_header
      _
    $region3: #{tpu_custom_call.1} parent=1 // loop_header
      %s17 = sphi 0, %s21
      %p18 = scmp.ge.s32.totalorder %s17, 4
      %s25 = sphi 0, %s25
      %s27 = sphi 0, %s25
      %s28 = sphi 0, %s27
      %s42 = sphi 0, %s28
      %s48 = sphi 0, %s50
      %s51 = sphi 0, %s48
      %s52 = sphi 0, %s51
      %s68 = sphi 0, %s52
      %s72 = sphi 0, %s72
      %s74 = sphi 0, %s72
      %s75 = sphi 0, %s74
      %s89 = sphi 0, %s75
      %s93 = sphi 0, %s93
      %s95 = sphi 0, %s93
      %s96 = sphi 0, %s95
      %s110 = sphi 0, %s96
      %s114 = sphi 0, %s114
      %s116 = sphi 0, %s114
      %s117 = sphi 0, %s116
      %s131 = sphi 0, %s117
      %s135 = sphi 0, %s135
      %s137 = sphi 0, %s135
      %s138 = sphi 0, %s137
      %s152 = sphi 0, %s138
    $region4: #{tpu_custom_call.1} parent=1 // loop_header_branch
      %20 = sbr.rel (%p18) target = $region8
    $region5: #{tpu_custom_call.1} parent=1 // loop_body
      %s22 = ssub.s32 %s17, 1
      %s23 = ssub.s32 %s17, 2
      %s24 = sadd.s32 %s17, 1
      %s26 = sadd.s32 %s25, 1
      %p29 = scmp.eq.s32.totalorder %s17, 1
      %p30 = scmp.ne.s32.totalorder %s25, %s27
      %p31 = scmp.eq.s32.totalorder %s17, 0
      %p32 = por %p30, %p31
      %p33 = scmp.ne.s32.totalorder %s25, %s27
      %p34 = scmp.eq.s32.totalorder %s22, 1
      %p35 = por %p33, %p34
      %p36 = scmp.ne.s32.totalorder %s27, %s28
      %p37 = scmp.eq.s32.totalorder %s22, 0
      %p38 = por %p36, %p37
      %p39 = scmp.ne.s32.totalorder %s27, %s28
      %p40 = scmp.eq.s32.totalorder %s23, 1
      %p41 = por %p39, %p40
      %p43 = scmp.ne.s32.totalorder %s28, %s42
      %p44 = scmp.eq.s32.totalorder %s23, 0
      %p45 = por %p43, %p44
      %s46 = ssub.s32 %s17, %s24
      %p47 = scmp.eq.s32.totalorder %s46, 0
      %s49 = sadd.s32 %s48, 1
      %s50 = scalar_select %p47, %s48, %s49
      %p53 = pneg %p47
      %p54 = scmp.eq.s32.totalorder %s17, 1
      %p55 = por %p53, %p54
      %p56 = scmp.ne.s32.totalorder %s48, %s51
      %p57 = scmp.eq.s32.totalorder %s17, 0
      %p58 = por %p56, %p57
      %p59 = scmp.ne.s32.totalorder %s48, %s51
      %p60 = scmp.eq.s32.totalorder %s22, 1
      %p61 = por %p59, %p60
      %p62 = scmp.ne.s32.totalorder %s51, %s52
      %p63 = scmp.eq.s32.totalorder %s22, 0
      %p64 = por %p62, %p63
      %p65 = scmp.ne.s32.totalorder %s51, %s52
      %p66 = scmp.eq.s32.totalorder %s23, 1
      %p67 = por %p65, %p66
      %p69 = scmp.ne.s32.totalorder %s52, %s68
      %p70 = scmp.eq.s32.totalorder %s23, 0
      %p71 = por %p69, %p70
      %s73 = sadd.s32 %s72, 1
      %p76 = scmp.eq.s32.totalorder %s17, 1
      %p77 = scmp.ne.s32.totalorder %s72, %s74
      %p78 = scmp.eq.s32.totalorder %s17, 0
      %p79 = por %p77, %p78
      %p80 = scmp.ne.s32.totalorder %s72, %s74
      %p81 = scmp.eq.s32.totalorder %s22, 1
      %p82 = por %p80, %p81
      %p83 = scmp.ne.s32.totalorder %s74, %s75
      %p84 = scmp.eq.s32.totalorder %s22, 0
      %p85 = por %p83, %p84
      %p86 = scmp.ne.s32.totalorder %s74, %s75
      %p87 = scmp.eq.s32.totalorder %s23, 1
      %p88 = por %p86, %p87
      %p90 = scmp.ne.s32.totalorder %s75, %s89
      %p91 = scmp.eq.s32.totalorder %s23, 0
      %p92 = por %p90, %p91
      %s94 = sadd.s32 %s93, 1
      %p97 = scmp.eq.s32.totalorder %s17, 1
      %p98 = scmp.ne.s32.totalorder %s93, %s95
      %p99 = scmp.eq.s32.totalorder %s17, 0
      %p100 = por %p98, %p99
      %p101 = scmp.ne.s32.totalorder %s93, %s95
      %p102 = scmp.eq.s32.totalorder %s22, 1
      %p103 = por %p101, %p102
      %p104 = scmp.ne.s32.totalorder %s95, %s96
      %p105 = scmp.eq.s32.totalorder %s22, 0
      %p106 = por %p104, %p105
      %p107 = scmp.ne.s32.totalorder %s95, %s96
      %p108 = scmp.eq.s32.totalorder %s23, 1
      %p109 = por %p107, %p108
      %p111 = scmp.ne.s32.totalorder %s96, %s110
      %p112 = scmp.eq.s32.totalorder %s23, 0
      %p113 = por %p111, %p112
      %s115 = sadd.s32 %s114, 1
      %p118 = scmp.eq.s32.totalorder %s17, 1
      %p119 = scmp.ne.s32.totalorder %s114, %s116
      %p120 = scmp.eq.s32.totalorder %s17, 0
      %p121 = por %p119, %p120
      %p122 = scmp.ne.s32.totalorder %s114, %s116
      %p123 = scmp.eq.s32.totalorder %s22, 1
      %p124 = por %p122, %p123
      %p125 = scmp.ne.s32.totalorder %s116, %s117
      %p126 = scmp.eq.s32.totalorder %s22, 0
      %p127 = por %p125, %p126
      %p128 = scmp.ne.s32.totalorder %s116, %s117
      %p129 = scmp.eq.s32.totalorder %s23, 1
      %p130 = por %p128, %p129
      %p132 = scmp.ne.s32.totalorder %s117, %s131
      %p133 = scmp.eq.s32.totalorder %s23, 0
      %p134 = por %p132, %p133
      %s136 = sadd.s32 %s135, 1
      %p139 = scmp.eq.s32.totalorder %s17, 1
      %p140 = scmp.ne.s32.totalorder %s135, %s137
      %p141 = scmp.eq.s32.totalorder %s17, 0
      %p142 = por %p140, %p141
      %p143 = scmp.ne.s32.totalorder %s135, %s137
      %p144 = scmp.eq.s32.totalorder %s22, 1
      %p145 = por %p143, %p144
      %p146 = scmp.ne.s32.totalorder %s137, %s138
      %p147 = scmp.eq.s32.totalorder %s22, 0
      %p148 = por %p146, %p147
      %p149 = scmp.ne.s32.totalorder %s137, %s138
      %p150 = scmp.eq.s32.totalorder %s23, 1
      %p151 = por %p149, %p150
      %p153 = scmp.ne.s32.totalorder %s138, %s152
      %p154 = scmp.eq.s32.totalorder %s23, 0
      %p155 = por %p153, %p154
      %p156 = scmp.le.s32.totalorder 1, %s17
      %p157 = scmp.lt.s32.totalorder %s17, 3
      %p158 = pnand %p156, %p157
      %p159 = pneg %p158
      // Predicated region
      $region9: #{tpu_custom_call.1} parent=5 // pred_check
        _
      $region10: #{tpu_custom_call.1} parent=5 // pred_check_branch
        %161 = sbr.rel (%p158) target = $region12
      $region11: #{tpu_custom_call.1} parent=5 // pred_region
        %s162 = ssub.s32 %s17, 1
        // Predicated region
        $region13: #{tpu_custom_call.1} parent=11 // pred_check
          %p163 = pneg %p38
        $region14: #{tpu_custom_call.1} parent=11 // pred_check_branch
          %165 = sbr.rel (%p163) target = $region16
        $region15: #{tpu_custom_call.1} parent=11 // pred_region
          %s167 = ssub.s32 128, 128
          %168 = vsyncadd [#allocation4], %s167
          %s169 = sshll.u32 [#allocation3], 4
          %s170 = int_to_ptr.vmem [resolvable:$true] %s169
          %175 = dma.hbm_to_vmem [thread:$0]  %s0, 128, %s170, [#allocation4], 64, 64, 4
        $region16: #{tpu_custom_call.1} parent=11 // pred_fallthru
          _
        // Predicated region
        $region17: #{tpu_custom_call.1} parent=11 // pred_check
          %p176 = pneg %p85
        $region18: #{tpu_custom_call.1} parent=11 // pred_check_branch
          %178 = sbr.rel (%p176) target = $region20
        $region19: #{tpu_custom_call.1} parent=11 // pred_region
          %s180 = ssub.s32 64, 64
          %181 = vsyncadd [#allocation7], %s180
          %s183 = sshll.u32 [#allocation8], 4
          %s184 = int_to_ptr.vmem [resolvable:$true] %s183
          %186 = dma.hbm_to_vmem [thread:$0]  %s2, 64, %s184, [#allocation7]
        $region20: #{tpu_custom_call.1} parent=11 // pred_fallthru
          _
        // Predicated region
        $region21: #{tpu_custom_call.1} parent=11 // pred_check
          %p187 = pneg %p106
        $region22: #{tpu_custom_call.1} parent=11 // pred_check_branch
          %189 = sbr.rel (%p187) target = $region24
        $region23: #{tpu_custom_call.1} parent=11 // pred_region
          %s191 = ssub.s32 1024, 1024
          %192 = vsyncadd [#allocation10], %s191
          %s193 = sshll.u32 [#allocation9], 4
          %s194 = int_to_ptr.vmem [resolvable:$true] %s193
          %199 = dma.hbm_to_vmem [thread:$0]  %s3, 1024, %s194, [#allocation10], 64, 64, 4
        $region24: #{tpu_custom_call.1} parent=11 // pred_fallthru
          _
        // Predicated region
        $region25: #{tpu_custom_call.1} parent=11 // pred_check
          %p200 = pneg %p127
        $region26: #{tpu_custom_call.1} parent=11 // pred_check_branch
          %202 = sbr.rel (%p200) target = $region28
        $region27: #{tpu_custom_call.1} parent=11 // pred_region
          %s204 = ssub.s32 1024, 1024
          %205 = vsyncadd [#allocation10], %s204
          %s206 = sshll.u32 [#allocation11], 4
          %s207 = int_to_ptr.vmem [resolvable:$true] %s206
          %212 = dma.hbm_to_vmem [thread:$0]  %s4, 1024, %s207, [#allocation10], 64, 64, 4
        $region28: #{tpu_custom_call.1} parent=11 // pred_fallthru
          _
      $region12: #{tpu_custom_call.1} parent=5 // pred_fallthru
        _
      %p213 = scmp.lt.s32.totalorder %s17, 2
      // Predicated region
      $region29: #{tpu_custom_call.1} parent=5 // pred_check
        %p214 = pneg %p213
      $region30: #{tpu_custom_call.1} parent=5 // pred_check_branch
        %216 = sbr.rel (%p214) target = $region32
      $region31: #{tpu_custom_call.1} parent=5 // pred_region
        // Predicated region
        $region33: #{tpu_custom_call.1} parent=31 // pred_check
          %p217 = pneg %p58
        $region34: #{tpu_custom_call.1} parent=31 // pred_check_branch
          %219 = sbr.rel (%p217) target = $region36
        $region35: #{tpu_custom_call.1} parent=31 // pred_region
          %s220 = sand.u32 %s17, 1
          %s221 = scalar_lea.sflag [#allocation7], %s220
          %s222 = sand.u32 %s48, 1
          %s223 = smul.addr %s222, 64
          %s224 = scalar_lea.vmem [#allocation6], %s223
          %s225 = smul.u32 16, %s17
          %s227 = ssub.s32 1024, 1024
          %228 = vsyncadd %s221, %s227
          %s229 = smul.addr %s225, 64
          %s230 = scalar_lea.hbm %s1, %s229
          %s231 = sshll.u32 %s224, 4
          %s232 = int_to_ptr.vmem [resolvable:$true] %s231
          %237 = dma.hbm_to_vmem [thread:$0]  %s230, 1024, %s232, %s221, 64, 64, 4
        $region36: #{tpu_custom_call.1} parent=31 // pred_fallthru
          _
      $region32: #{tpu_custom_call.1} parent=5 // pred_fallthru
        _
      %p238 = scmp.le.s32.totalorder 1, %s17
      %p239 = scmp.lt.s32.totalorder %s17, 3
      %p240 = pnand %p238, %p239
      %p241 = pneg %p240
      // Predicated region
      $region37: #{tpu_custom_call.1} parent=5 // pred_check
        _
      $region38: #{tpu_custom_call.1} parent=5 // pred_check_branch
        %243 = sbr.rel (%p240) target = $region40
      $region39: #{tpu_custom_call.1} parent=5 // pred_region
        %s244 = ssub.s32 %s17, 1
        // Predicated region
        $region41: #{tpu_custom_call.1} parent=39 // pred_check
          %p245 = pneg %p38
        $region42: #{tpu_custom_call.1} parent=39 // pred_check_branch
          %247 = sbr.rel (%p245) target = $region44
        $region43: #{tpu_custom_call.1} parent=39 // pred_region
          %248 = dma.done [#allocation4], 128
        $region44: #{tpu_custom_call.1} parent=39 // pred_fallthru
          _
        %s249 = sand.u32 %s22, 1
        %s250 = scalar_lea.sflag [#allocation7], %s249
        %s251 = sand.u32 %s51, 1
        %s252 = smul.addr %s251, 64
        %s253 = scalar_lea.vmem [#allocation6], %s252
        // Predicated region
        $region45: #{tpu_custom_call.1} parent=39 // pred_check
          %p254 = pneg %p64
        $region46: #{tpu_custom_call.1} parent=39 // pred_check_branch
          %256 = sbr.rel (%p254) target = $region48
        $region47: #{tpu_custom_call.1} parent=39 // pred_region
          %257 = dma.done %s250, 1024
        $region48: #{tpu_custom_call.1} parent=39 // pred_fallthru
          _
        // Predicated region
        $region49: #{tpu_custom_call.1} parent=39 // pred_check
          %p258 = pneg %p85
        $region50: #{tpu_custom_call.1} parent=39 // pred_check_branch
          %260 = sbr.rel (%p258) target = $region52
        $region51: #{tpu_custom_call.1} parent=39 // pred_region
          %261 = dma.done [#allocation7], 64
        $region52: #{tpu_custom_call.1} parent=39 // pred_fallthru
          _
        // Predicated region
        $region53: #{tpu_custom_call.1} parent=39 // pred_check
          %p262 = pneg %p106
        $region54: #{tpu_custom_call.1} parent=39 // pred_check_branch
          %264 = sbr.rel (%p262) target = $region56
        $region55: #{tpu_custom_call.1} parent=39 // pred_region
          %265 = dma.done [#allocation10], 1024
        $region56: #{tpu_custom_call.1} parent=39 // pred_fallthru
          _
        // Predicated region
        $region57: #{tpu_custom_call.1} parent=39 // pred_check
          %p266 = pneg %p127
        $region58: #{tpu_custom_call.1} parent=39 // pred_check_branch
          %268 = sbr.rel (%p266) target = $region60
        $region59: #{tpu_custom_call.1} parent=39 // pred_region
          %269 = dma.done [#allocation10], 1024
        $region60: #{tpu_custom_call.1} parent=39 // pred_fallthru
          _
        %p270 = pneg %p38
        %p271 = pneg %p35
        %s272 = sand.u32 %s22, 1
        %s273 = scalar_lea.sflag [#allocation7], %s272
        %s274 = sand.u32 %s51, 1
        %s275 = smul.addr %s274, 64
        %s276 = scalar_lea.vmem [#allocation6], %s275
        %p277 = pneg %p64
        %p278 = pneg %p61
        %p279 = pneg %p85
        %p280 = pneg %p82
        %p281 = pneg %p106
        %p282 = pneg %p103
        %p283 = pneg %p127
        %p284 = pneg %p124
        %p285 = pneg %p148
        %p286 = pneg %p145
        %s287 = smul.u32 16, %s22
        %p289 = scmp.eq.s32.totalorder %s22, 0
        // Predicated region
        $region61: #{tpu_custom_call.1} parent=39 // pred_check
          %p290 = pneg %p289
        $region62: #{tpu_custom_call.1} parent=39 // pred_check_branch
          %292 = sbr.rel (%p290) target = $region64
        $region63: #{tpu_custom_call.1} parent=39 // pred_region
          %293 = vst [vmem:[#allocation2] sm:$0xff] 0.0
        $region64: #{tpu_custom_call.1} parent=39 // pred_fallthru
          _
        %s294 = smul.addr %s22, 4
        %s295 = scalar_lea.vmem [#allocation3], %s294
        %v296 = vld [vmem:[%s295] sm:$0xf]
        %v297 = vld [vmem:[#allocation2] sm:$0xff]
        %v298 = vld [vmem:[%s253] sm:$0xf]
        %v299 = vld [vmem:[%s253 + $0x4] sm:$0xf]
        %v300 = vld [vmem:[%s253 + $0x8] sm:$0xf]
        %v301 = vld [vmem:[%s253 + $0xc] sm:$0xf]
        %v302 = vld [vmem:[%s253 + $0x10] sm:$0xf]
        %v303 = vld [vmem:[%s253 + $0x14] sm:$0xf]
        %v304 = vld [vmem:[%s253 + $0x18] sm:$0xf]
        %v305 = vld [vmem:[%s253 + $0x1c] sm:$0xf]
        %v306 = vld [vmem:[%s253 + $0x20] sm:$0xf]
        %v307 = vld [vmem:[%s253 + $0x24] sm:$0xf]
        %v308 = vld [vmem:[%s253 + $0x28] sm:$0xf]
        %v309 = vld [vmem:[%s253 + $0x2c] sm:$0xf]
        %v310 = vld [vmem:[%s253 + $0x30] sm:$0xf]
        %v311 = vld [vmem:[%s253 + $0x34] sm:$0xf]
        %v312 = vld [vmem:[%s253 + $0x38] sm:$0xf]
        %v313 = vld [vmem:[%s253 + $0x3c] sm:$0xf]
        %v330 = vunpack.c.l.b16 %v298
        %v331 = vunpack.c.l.b16 %v299
        %v332 = vunpack.c.l.b16 %v300
        %v333 = vunpack.c.l.b16 %v301
        %v334 = vunpack.c.l.b16 %v302
        %v335 = vunpack.c.l.b16 %v303
        %v336 = vunpack.c.l.b16 %v304
        %v337 = vunpack.c.l.b16 %v305
        %v338 = vunpack.c.l.b16 %v306
        %v339 = vunpack.c.l.b16 %v307
        %v340 = vunpack.c.l.b16 %v308
        %v341 = vunpack.c.l.b16 %v309
        %v342 = vunpack.c.l.b16 %v310
        %v343 = vunpack.c.l.b16 %v311
        %v344 = vunpack.c.l.b16 %v312
        %v345 = vunpack.c.l.b16 %v313
        %v346 = vpack.c.b16 %v331, %v330
        %v347 = vpack.c.b16 %v333, %v332
        %v348 = vpack.c.b16 %v335, %v334
        %v349 = vpack.c.b16 %v337, %v336
        %v350 = vpack.c.b16 %v339, %v338
        %v351 = vpack.c.b16 %v341, %v340
        %v352 = vpack.c.b16 %v343, %v342
        %v353 = vpack.c.b16 %v345, %v344
        %362 = vmatprep.subr.bf16.mxu0 0
        %363 = vmatpush1.bf16.msra.mxu0 %v353
        %364 = vmatprep.subr.bf16.mxu0 0
        %365 = vmatpush1.bf16.msra.mxu0 %v352
        %366 = vmatprep.subr.bf16.mxu0 0
        %367 = vmatpush1.bf16.msra.mxu0 %v351
        %368 = vmatprep.subr.bf16.mxu0 0
        %369 = vmatpush1.bf16.msra.mxu0 %v350
        %370 = vmatprep.subr.bf16.mxu0 0
        %371 = vmatpush1.bf16.msra.mxu0 %v349
        %372 = vmatprep.subr.bf16.mxu0 0
        %373 = vmatpush1.bf16.msra.mxu0 %v348
        %374 = vmatprep.subr.bf16.mxu0 0
        %375 = vmatpush1.bf16.msra.mxu0 %v347
        %376 = vmatprep.subr.bf16.mxu0 0
        %377 = vmatpush1.bf16.msra.mxu0 %v346
        %378 = vmatprep.subr.bf16.mxu0 0
        %379 = vmatpush2.bf16.msra.mxu0 0
        %380 = vmatprep.subr.bf16.mxu0 0
        %381 = vmatpush2.bf16.msra.mxu0 0
        %382 = vmatprep.subr.bf16.mxu0 0
        %383 = vmatpush2.bf16.msra.mxu0 0
        %384 = vmatprep.subr.bf16.mxu0 0
        %385 = vmatpush2.bf16.msra.mxu0 0
        %386 = vmatprep.subr.bf16.mxu0 0
        %387 = vmatpush2.bf16.msra.mxu0 0
        %388 = vmatprep.subr.bf16.mxu0 0
        %389 = vmatpush2.bf16.msra.mxu0 0
        %390 = vmatprep.subr.bf16.mxu0 0
        %391 = vmatpush2.bf16.msra.mxu0 0
        %392 = vmatprep.subr.bf16.mxu0 0
        %393 = vmatpush2.bf16.msra.mxu0 0
        %394 = vmatprep.mubr.bf16.mxu0 0
        %395 = vmatmul.mubr.bf16.gmra.mxu0 %v296
        %v396 = vpop.f32.mrf.mxu0
        %v397 = vadd.f32 0.0, %v396
        %v398 = vpop.f32.mrf.mxu0
        %v399 = vpop.f32.mrf.mxu0
        %v400 = vpop.f32.mrf.mxu0
        %401 = vdwg.mxu0
        %v402 = vadd.f32 %v297, %v397
        %403 = vst [vmem:[#allocation2] sm:$0xff] %v402
        %p404 = scmp.eq.s32.totalorder %s22, 1
        // Predicated region
        $region65: #{tpu_custom_call.1} parent=39 // pred_check
          %p405 = pneg %p404
        $region66: #{tpu_custom_call.1} parent=39 // pred_check_branch
          %407 = sbr.rel (%p405) target = $region68
        $region67: #{tpu_custom_call.1} parent=39 // pred_region
          %v408 = vld [vmem:[#allocation8] sm:$0x1]
          %v409 = vld [vmem:[#allocation8 + $0x1] sm:$0x1]
          %v410 = vld [vmem:[#allocation8 + $0x2] sm:$0x1]
          %v411 = vld [vmem:[#allocation8 + $0x3] sm:$0x1]
          %v412 = vld [vmem:[#allocation2] sm:$0xff]
          %v413 = vrot.slane %v412, 4
          %v414 = vadd.f32 %v412, %v413
          %v415 = vrot.slane %v414, 2
          %v416 = vadd.f32 %v414, %v415
          %v417 = vrot.slane %v416, 1
          %v418 = vadd.f32 %v416, %v417
          %v419 = vrcp.pop 8.0
          %v420 = vmul.f32 %v418, %v419
          %v421 = vsub.f32 %v412, %v420
          %v422 = vmul.f32 %v421, %v421
          %v423 = vrot.slane %v422, 4
          %v424 = vadd.f32 %v422, %v423
          %v425 = vrot.slane %v424, 2
          %v426 = vadd.f32 %v424, %v425
          %v427 = vrot.slane %v426, 1
          %v428 = vadd.f32 %v426, %v427
          %v429 = vmul.f32 %v428, %v419
          %v430 = vadd.f32 %v429, 1e-05
          %v431 = vrsqrt.pop %v430
          %v432 = vmul.f32 %v431, %v408
          %v433 = vlaneseq
          %v434 = vshrl.u32 %v433, 7
          %v435 = vsub.s32 0, %v434
          %v436 = vrot.slane %v432, %v435
          %v437 = vmul.f32 %v421, %v436
          %v438 = vlaneseq
          %v439 = vshrl.u32 %v438, 7
          %v440 = vsub.s32 0, %v439
          %v441 = vrot.slane %v409, %v440
          %v442 = vadd.f32 %v437, %v441
          %v443 = vmax.f32 %v442, 0.0
          %v444 = vpack.c.bf16 %v443, %v443
          %v445 = vld [vmem:[#allocation9] sm:$0xf]
          %v446 = vld [vmem:[#allocation9 + $0x4] sm:$0xf]
          %v447 = vld [vmem:[#allocation9 + $0x8] sm:$0xf]
          %v448 = vld [vmem:[#allocation9 + $0xc] sm:$0xf]
          %v449 = vld [vmem:[#allocation9 + $0x10] sm:$0xf]
          %v450 = vld [vmem:[#allocation9 + $0x14] sm:$0xf]
          %v451 = vld [vmem:[#allocation9 + $0x18] sm:$0xf]
          %v452 = vld [vmem:[#allocation9 + $0x1c] sm:$0xf]
          %v453 = vld [vmem:[#allocation9 + $0x20] sm:$0xf]
          %v454 = vld [vmem:[#allocation9 + $0x24] sm:$0xf]
          %v455 = vld [vmem:[#allocation9 + $0x28] sm:$0xf]
          %v456 = vld [vmem:[#allocation9 + $0x2c] sm:$0xf]
          %v457 = vld [vmem:[#allocation9 + $0x30] sm:$0xf]
          %v458 = vld [vmem:[#allocation9 + $0x34] sm:$0xf]
          %v459 = vld [vmem:[#allocation9 + $0x38] sm:$0xf]
          %v460 = vld [vmem:[#allocation9 + $0x3c] sm:$0xf]
          %v477 = vunpack.c.l.b16 %v445
          %v478 = vunpack.c.l.b16 %v446
          %v479 = vunpack.c.l.b16 %v447
          %v480 = vunpack.c.l.b16 %v448
          %v481 = vunpack.c.l.b16 %v449
          %v482 = vunpack.c.l.b16 %v450
          %v483 = vunpack.c.l.b16 %v451
          %v484 = vunpack.c.l.b16 %v452
          %v485 = vunpack.c.l.b16 %v453
          %v486 = vunpack.c.l.b16 %v454
          %v487 = vunpack.c.l.b16 %v455
          %v488 = vunpack.c.l.b16 %v456
          %v489 = vunpack.c.l.b16 %v457
          %v490 = vunpack.c.l.b16 %v458
          %v491 = vunpack.c.l.b16 %v459
          %v492 = vunpack.c.l.b16 %v460
          %v493 = vpack.c.b16 %v478, %v477
          %v494 = vpack.c.b16 %v480, %v479
          %v495 = vpack.c.b16 %v482, %v481
          %v496 = vpack.c.b16 %v484, %v483
          %v497 = vpack.c.b16 %v486, %v485
          %v498 = vpack.c.b16 %v488, %v487
          %v499 = vpack.c.b16 %v490, %v489
          %v500 = vpack.c.b16 %v492, %v491
          %509 = vmatprep.subr.bf16.mxu0 0
          %510 = vmatpush1.bf16.msra.mxu0 %v500
          %511 = vmatprep.subr.bf16.mxu0 0
          %512 = vmatpush1.bf16.msra.mxu0 %v499
          %513 = vmatprep.subr.bf16.mxu0 0
          %514 = vmatpush1.bf16.msra.mxu0 %v498
          %515 = vmatprep.subr.bf16.mxu0 0
          %516 = vmatpush1.bf16.msra.mxu0 %v497
          %517 = vmatprep.subr.bf16.mxu0 0
          %518 = vmatpush1.bf16.msra.mxu0 %v496
          %519 = vmatprep.subr.bf16.mxu0 0
          %520 = vmatpush1.bf16.msra.mxu0 %v495
          %521 = vmatprep.subr.bf16.mxu0 0
          %522 = vmatpush1.bf16.msra.mxu0 %v494
          %523 = vmatprep.subr.bf16.mxu0 0
          %524 = vmatpush1.bf16.msra.mxu0 %v493
          %525 = vmatprep.subr.bf16.mxu0 0
          %526 = vmatpush2.bf16.msra.mxu0 0
          %527 = vmatprep.subr.bf16.mxu0 0
          %528 = vmatpush2.bf16.msra.mxu0 0
          %529 = vmatprep.subr.bf16.mxu0 0
          %530 = vmatpush2.bf16.msra.mxu0 0
          %531 = vmatprep.subr.bf16.mxu0 0
          %532 = vmatpush2.bf16.msra.mxu0 0
          %533 = vmatprep.subr.bf16.mxu0 0
          %534 = vmatpush2.bf16.msra.mxu0 0
          %535 = vmatprep.subr.bf16.mxu0 0
          %536 = vmatpush2.bf16.msra.mxu0 0
          %537 = vmatprep.subr.bf16.mxu0 0
          %538 = vmatpush2.bf16.msra.mxu0 0
          %539 = vmatprep.subr.bf16.mxu0 0
          %540 = vmatpush2.bf16.msra.mxu0 0
          %541 = vmatprep.mubr.bf16.mxu0 0
          %542 = vmatmul.mubr.bf16.gmra.mxu0 %v444
          %v543 = vpop.f32.mrf.mxu0
          %v544 = vadd.f32 0.0, %v543
          %v545 = vpop.f32.mrf.mxu0
          %v546 = vpop.f32.mrf.mxu0
          %v547 = vpop.f32.mrf.mxu0
          %548 = vdwg.mxu0
          %v549 = vrot.slane %v544, 4
          %v550 = vadd.f32 %v544, %v549
          %v551 = vrot.slane %v550, 2
          %v552 = vadd.f32 %v550, %v551
          %v553 = vrot.slane %v552, 1
          %v554 = vadd.f32 %v552, %v553
          %v555 = vmul.f32 %v554, %v419
          %v556 = vsub.f32 %v544, %v555
          %v557 = vmul.f32 %v556, %v556
          %v558 = vrot.slane %v557, 4
          %v559 = vadd.f32 %v557, %v558
          %v560 = vrot.slane %v559, 2
          %v561 = vadd.f32 %v559, %v560
          %v562 = vrot.slane %v561, 1
          %v563 = vadd.f32 %v561, %v562
          %v564 = vmul.f32 %v563, %v419
          %v565 = vadd.f32 %v564, 1e-05
          %v566 = vrsqrt.pop %v565
          %v567 = vmul.f32 %v566, %v410
          %v568 = vlaneseq
          %v569 = vshrl.u32 %v568, 7
          %v570 = vsub.s32 0, %v569
          %v571 = vrot.slane %v567, %v570
          %v572 = vmul.f32 %v556, %v571
          %v573 = vlaneseq
          %v574 = vshrl.u32 %v573, 7
          %v575 = vsub.s32 0, %v574
          %v576 = vrot.slane %v411, %v575
          %v577 = vadd.f32 %v572, %v576
          %v578 = vmax.f32 %v577, 0.0
          %v579 = vpack.c.bf16 %v578, %v578
          %v580 = vld [vmem:[#allocation11] sm:$0xf]
          %v581 = vld [vmem:[#allocation11 + $0x4] sm:$0xf]
          %v582 = vld [vmem:[#allocation11 + $0x8] sm:$0xf]
          %v583 = vld [vmem:[#allocation11 + $0xc] sm:$0xf]
          %v584 = vld [vmem:[#allocation11 + $0x10] sm:$0xf]
          %v585 = vld [vmem:[#allocation11 + $0x14] sm:$0xf]
          %v586 = vld [vmem:[#allocation11 + $0x18] sm:$0xf]
          %v587 = vld [vmem:[#allocation11 + $0x1c] sm:$0xf]
          %v588 = vld [vmem:[#allocation11 + $0x20] sm:$0xf]
          %v589 = vld [vmem:[#allocation11 + $0x24] sm:$0xf]
          %v590 = vld [vmem:[#allocation11 + $0x28] sm:$0xf]
          %v591 = vld [vmem:[#allocation11 + $0x2c] sm:$0xf]
          %v592 = vld [vmem:[#allocation11 + $0x30] sm:$0xf]
          %v593 = vld [vmem:[#allocation11 + $0x34] sm:$0xf]
          %v594 = vld [vmem:[#allocation11 + $0x38] sm:$0xf]
          %v595 = vld [vmem:[#allocation11 + $0x3c] sm:$0xf]
          %v612 = vunpack.c.l.b16 %v580
          %v613 = vunpack.c.l.b16 %v581
          %v614 = vunpack.c.l.b16 %v582
          %v615 = vunpack.c.l.b16 %v583
          %v616 = vunpack.c.l.b16 %v584
          %v617 = vunpack.c.l.b16 %v585
          %v618 = vunpack.c.l.b16 %v586
          %v619 = vunpack.c.l.b16 %v587
          %v620 = vunpack.c.l.b16 %v588
          %v621 = vunpack.c.l.b16 %v589
          %v622 = vunpack.c.l.b16 %v590
          %v623 = vunpack.c.l.b16 %v591
          %v624 = vunpack.c.l.b16 %v592
          %v625 = vunpack.c.l.b16 %v593
          %v626 = vunpack.c.l.b16 %v594
          %v627 = vunpack.c.l.b16 %v595
          %v628 = vpack.c.b16 %v613, %v612
          %v629 = vpack.c.b16 %v615, %v614
          %v630 = vpack.c.b16 %v617, %v616
          %v631 = vpack.c.b16 %v619, %v618
          %v632 = vpack.c.b16 %v621, %v620
          %v633 = vpack.c.b16 %v623, %v622
          %v634 = vpack.c.b16 %v625, %v624
          %v635 = vpack.c.b16 %v627, %v626
          %644 = vmatprep.subr.bf16.mxu0 0
          %645 = vmatpush1.bf16.msra.mxu0 %v635
          %646 = vmatprep.subr.bf16.mxu0 0
          %647 = vmatpush1.bf16.msra.mxu0 %v634
          %648 = vmatprep.subr.bf16.mxu0 0
          %649 = vmatpush1.bf16.msra.mxu0 %v633
          %650 = vmatprep.subr.bf16.mxu0 0
          %651 = vmatpush1.bf16.msra.mxu0 %v632
          %652 = vmatprep.subr.bf16.mxu0 0
          %653 = vmatpush1.bf16.msra.mxu0 %v631
          %654 = vmatprep.subr.bf16.mxu0 0
          %655 = vmatpush1.bf16.msra.mxu0 %v630
          %656 = vmatprep.subr.bf16.mxu0 0
          %657 = vmatpush1.bf16.msra.mxu0 %v629
          %658 = vmatprep.subr.bf16.mxu0 0
          %659 = vmatpush1.bf16.msra.mxu0 %v628
          %660 = vmatprep.subr.bf16.mxu0 0
          %661 = vmatpush2.bf16.msra.mxu0 0
          %662 = vmatprep.subr.bf16.mxu0 0
          %663 = vmatpush2.bf16.msra.mxu0 0
          %664 = vmatprep.subr.bf16.mxu0 0
          %665 = vmatpush2.bf16.msra.mxu0 0
          %666 = vmatprep.subr.bf16.mxu0 0
          %667 = vmatpush2.bf16.msra.mxu0 0
          %668 = vmatprep.subr.bf16.mxu0 0
          %669 = vmatpush2.bf16.msra.mxu0 0
          %670 = vmatprep.subr.bf16.mxu0 0
          %671 = vmatpush2.bf16.msra.mxu0 0
          %672 = vmatprep.subr.bf16.mxu0 0
          %673 = vmatpush2.bf16.msra.mxu0 0
          %674 = vmatprep.subr.bf16.mxu0 0
          %675 = vmatpush2.bf16.msra.mxu0 0
          %676 = vmatprep.mubr.bf16.mxu0 0
          %677 = vmatmul.mubr.bf16.gmra.mxu0 %v579
          %v678 = vpop.f32.mrf.mxu0
          %v679 = vadd.f32 0.0, %v678
          %v680 = vpop.f32.mrf.mxu0
          %v681 = vpop.f32.mrf.mxu0
          %v682 = vpop.f32.mrf.mxu0
          %683 = vdwg.mxu0
          %v684 = vrot.slane %v679, 4
          %v685 = vadd.f32 %v679, %v684
          %v686 = vrot.slane %v685, 2
          %v687 = vadd.f32 %v685, %v686
          %v688 = vrot.slane %v687, 1
          %v689 = vadd.f32 %v687, %v688
          %v690 = vmul.f32 %v689, %v419
          %v691 = vsub.f32 %v679, %v690
          %v692 = vmul.f32 %v691, %v691
          %v693 = vrot.slane %v692, 4
          %v694 = vadd.f32 %v692, %v693
          %v695 = vrot.slane %v694, 2
          %v696 = vadd.f32 %v694, %v695
          %v697 = vrot.slane %v696, 1
          %v698 = vadd.f32 %v696, %v697
          %v699 = vmul.f32 %v698, %v419
          %v700 = vadd.f32 %v699, 1e-05
          %v701 = vrsqrt.pop %v700
          %v702 = vmul.f32 %v691, %v701
          %v703 = vlaneseq
          %v704 = vand.u32 %v703, 127
          %vm705 = vcmp.lt.s32.totalorder %v704, 35
          %v706 = vsel %vm705, %v702, -1e+30
          %707 = vmax.xlane.f32.xlu0 %v706
          %v708 = vpop.xlane.xlu0 %707
          %v709 = vsub.f32 %v706, %v708
          %v710 = vmul.f32 %v709, 1.442695
          %v711 = vpow.pop %v710
          %v712 = vsel %vm705, %v711, 0.0
          %713 = vadd.xlane.f32.xlu0 %v712
          %v714 = vpop.xlane.xlu0 %713
          %v715 = vlog2.pop %v714
          %v716 = vmul.f32 %v715, 0.6931472
          %v717 = vsub.f32 %v709, %v716
          %718 = vst [vmem:[#allocation12] sm:$0xff] %v717
        $region68: #{tpu_custom_call.1} parent=39 // pred_fallthru
          _
        // Predicated region
        $region69: #{tpu_custom_call.1} parent=39 // pred_check
          %p719 = pneg %p145
        $region70: #{tpu_custom_call.1} parent=39 // pred_check_branch
          %721 = sbr.rel (%p719) target = $region72
        $region71: #{tpu_custom_call.1} parent=39 // pred_region
          %s723 = ssub.s32 128, 128
          %724 = vsyncadd [#allocation5], %s723
          %s726 = sshll.u32 [#allocation12], 4
          %s727 = int_to_ptr.vmem [resolvable:$true] %s726
          %729 = dma.vmem_to_hbm [thread:$0]  %s727, 128, %s5, [#allocation5]
        $region72: #{tpu_custom_call.1} parent=39 // pred_fallthru
          _
        // Predicated region
        $region73: #{tpu_custom_call.1} parent=39 // pred_check
          %p730 = pneg %p145
        $region74: #{tpu_custom_call.1} parent=39 // pred_check_branch
          %732 = sbr.rel (%p730) target = $region76
        $region75: #{tpu_custom_call.1} parent=39 // pred_region
          %733 = dma.done [#allocation5], 128
        $region76: #{tpu_custom_call.1} parent=39 // pred_fallthru
          _
      $region40: #{tpu_custom_call.1} parent=5 // pred_fallthru
        _
      %p734 = scmp.le.s32.totalorder 2, %s17
      // Predicated region
      $region77: #{tpu_custom_call.1} parent=5 // pred_check
        %p735 = pneg %p734
      $region78: #{tpu_custom_call.1} parent=5 // pred_check_branch
        %737 = sbr.rel (%p735) target = $region80
      $region79: #{tpu_custom_call.1} parent=5 // pred_region
        %s738 = ssub.s32 %s17, 2
      $region80: #{tpu_custom_call.1} parent=5 // pred_fallthru
        _
    $region6: #{tpu_custom_call.1} parent=1 // loop_footer
      %s21 = sadd.s32 1, %s17
    $region7: #{tpu_custom_call.1} parent=1 // loop_footer_branch
      %16 = sbr.rel target = $region3
    $region8: #{tpu_custom_call.1} parent=1 // loop_exit
      _
    %739 = vsyncpa [#allocation4], 1
    %s740 = scalar_lea.sflag [#allocation4], 1
    %741 = vsyncpa %s740, 1
    %742 = vsyncpa [#allocation7], 1
    %s743 = scalar_lea.sflag [#allocation7], 1
    %744 = vsyncpa %s743, 1
    %745 = vsyncpa [#allocation10], 1
    %746 = vsyncpa [#allocation5], 1
    %s747 = scalar_lea.sflag [#allocation5], 1
    %748 = vsyncpa %s747, 1

</llo_original>
